<compile_context>
chip_gen: v6e
topology: v6e:2x2x1
jax: 0.10.0
libtpu: 0.0.40
codegen_flags: <defaults>
</compile_context>

<pallas_src>
import functools
import math

import jax
import jax.numpy as jnp
from jax.experimental import pallas as pl
from jax.experimental.pallas import tpu as pltpu


# ----------------------------- Pallas kernel ------------------------------

def _se_kernel(x_ref, w1_ref, w2_ref, alpha_ref, o_ref, *, inv_p, use_mxu):
    # x_ref:     (Nb, C, P)  -- Nb images, channels in sublanes, spatial in lanes
    # w1_ref:    (hid, C)    -- fc1 weight, native PyTorch (out, in) layout
    # w2_ref:    (C, hid)    -- fc2 weight, native PyTorch (out, in) layout
    # alpha_ref: SMEM (1,)   -- PReLU shared slope
    x = x_ref[...].astype(jnp.float32)                     # f32 compute path

    # Global average pool over spatial (lane reduction) -> (Nb, C).
    # inv_p uses the TRUE H*W, so any zero-padded lanes don't bias the mean.
    pooled = jnp.sum(x, axis=-1) * inv_p

    w1 = w1_ref[...].astype(jnp.float32)                   # (hid, C)
    w2 = w2_ref[...].astype(jnp.float32)                   # (C, hid)

    if use_mxu:
        # Large C/hid: real matmuls, MXU with f32 accumulation.
        z = jax.lax.dot_general(pooled, w1, (((1,), (1,)), ((), ())),
                                preferred_element_type=jnp.float32)   # (Nb, hid)
    else:
        # Small C/hid (e.g. 64x4): keep on VPU/XLU -- an MXU matmul would
        # under-fill the array and add result-FIFO drain for no benefit.
        z = jnp.sum(pooled[:, None, :] * w1[None, :, :], axis=-1)     # (Nb, hid)

    # PReLU (single shared slope).
    a = alpha_ref[0]
    z = jnp.where(z >= 0, z, a * z)

    if use_mxu:
        s = jax.lax.dot_general(z, w2, (((1,), (1,)), ((), ())),
                                preferred_element_type=jnp.float32)   # (Nb, C)
    else:
        s = jnp.sum(z[:, None, :] * w2[None, :, :], axis=-1)          # (Nb, C)

    # Sigmoid on the EUP, then channel-wise re-scale (lane broadcast over P).
    s = jax.nn.sigmoid(s)
    o_ref[...] = (x * s[:, :, None]).astype(o_ref.dtype)


# ----------------------------- block sizing -------------------------------

def _choose_batch_block(n, c, p, itemsize):
    """Pick Nb (divisor of n) so blocks are MiB-scale but VMEM-safe."""
    # ~3 MiB per block: >=2 MiB blocks measured at ~85% of HBM roofline, and
    # 4 live buffers (in+out, double-buffered) stay under v5e's 16 MiB default
    # scoped-VMEM limit and well under v7x's 64 MiB/TC physical VMEM.
    budget_bytes = 3 * 1024 * 1024
    cap = max(1, budget_bytes // (c * p * itemsize))
    # Keep the grid >= 2 steps so ("parallel",) can feed both v7x TensorCores
    # and the software pipeline actually overlaps DMA with compute.
    if n >= 2:
        cap = min(cap, (n + 1) // 2)
    nb = 1
    for d in range(1, n + 1):          # largest divisor of n that fits the cap
        if n % d == 0 and d <= cap:
            nb = d
    return nb


def _call_se(x_flat, w1, w2, alpha, true_p):
    n, c, p = x_flat.shape
    hid = w1.shape[0]
    nb = _choose_batch_block(n, c, p, x_flat.dtype.itemsize)
    grid = (n // nb,)
    # MXU only pays once both contraction dims are big enough to fill it.
    use_mxu = (c >= 512) and (hid >= 128)
    kernel = functools.partial(_se_kernel, inv_p=1.0 / float(true_p),
                               use_mxu=use_mxu)
    return pl.pallas_call(
        kernel,
        out_shape=jax.ShapeDtypeStruct((n, c, p), x_flat.dtype),
        grid=grid,
        in_specs=[
            pl.BlockSpec((nb, c, p), lambda i: (i, 0, 0)),
            pl.BlockSpec((hid, c), lambda i: (0, 0)),     # resident in VMEM
            pl.BlockSpec((c, hid), lambda i: (0, 0)),     # resident in VMEM
            pl.BlockSpec(memory_space=pltpu.MemorySpace.SMEM),
        ],
        out_specs=pl.BlockSpec((nb, c, p), lambda i: (i, 0, 0)),
        compiler_params=pltpu.CompilerParams(
            dimension_semantics=("parallel",)),
    )(x_flat, w1, w2, alpha)


# ------------------------------ JAX wrapper -------------------------------

def se_layer_forward(x_nchw, params):
    """SELayer forward.

    x_nchw: (N, C, H, W)
    params: w1 (C//r, C), w2 (C, C//r), alpha (1,)  -- PyTorch layouts.
    """
    n, c, h, w = x_nchw.shape
    p = h * w
    x_flat = x_nchw.reshape(n, c, p)                 # pure view, no transpose

    # Keep the lane (last) dim a dense multiple of 128 -> unmasked vector
    # stores.  Zero padding is mean-safe because the kernel divides by true p.
    p_pad = ((p + 127) // 128) * 128
    if p_pad != p:
        x_flat = jnp.pad(x_flat, ((0, 0), (0, 0), (0, p_pad - p)))

    w1 = params["w1"].astype(jnp.float32)            # (hid, C), native layout
    w2 = params["w2"].astype(jnp.float32)            # (C, hid), native layout
    alpha = params["alpha"].reshape(1).astype(jnp.float32)

    out = _call_se(x_flat, w1, w2, alpha, true_p=p)
    if p_pad != p:
        out = out[:, :, :p]
    return out.reshape(n, c, h, w)


# -------------------------- Pure-JAX reference ----------------------------

def _reference_forward(x, prm):
    y = jnp.mean(x, axis=(2, 3))                     # (N, C)  adaptive avg pool -> 1x1
    z = y @ prm["w1"].T                              # (N, C//r), no bias
    z = jnp.where(z >= 0, z, prm["alpha"][0] * z)    # PReLU
    s = z @ prm["w2"].T                              # (N, C), no bias
    s = jax.nn.sigmoid(s)
    return x * s[:, :, None, None]


# --------------------------------- main ------------------------------------

if __name__ == "__main__":
    N, C, H, W = 2, 64, 16, 16
    reduction = 16
    hid = C // reduction

    key = jax.random.PRNGKey(0)
    k1, k2, k3 = jax.random.split(key, 3)

    bound1 = 1.0 / math.sqrt(C)
    bound2 = 1.0 / math.sqrt(hid)
    params = {
        "w1": jax.random.uniform(k1, (hid, C), jnp.float32, -bound1, bound1),
        "w2": jax.random.uniform(k2, (C, hid), jnp.float32, -bound2, bound2),
        "alpha": jnp.full((1,), 0.25, jnp.float32),   # nn.PReLU() default init
    }

    x = jax.random.normal(k3, (N, C, H, W), jnp.float32)

    out = se_layer_forward(x, params)
    out = jax.block_until_ready(out)

    ref = _reference_forward(x, params)
    assert out.shape == ref.shape == (N, C, H, W)
    assert out.dtype == x.dtype
    max_err = float(jnp.max(jnp.abs(out - ref)))
    if max_err > 1e-4:
        raise AssertionError(f"mismatch vs reference: max abs err = {max_err}")

    print("KERNEL_OK")
</pallas_src>

<mosaic_0001>
module attributes {stable_mosaic.version = 11 : i64} {
  func.func @_se_kernel(%arg0: i32, %arg1: memref<1x64x256xf32, #tpu.memory_space<vmem>>, %arg2: memref<4x64xf32, #tpu.memory_space<vmem>>, %arg3: memref<64x4xf32, #tpu.memory_space<vmem>>, %arg4: memref<1xf32, #tpu.memory_space<smem>>, %arg5: memref<1x64x256xf32, #tpu.memory_space<vmem>>) attributes {dimension_semantics = [#tpu.dimension_semantics<parallel>], iteration_bounds = array<i64: 2>, scalar_prefetch = 0 : i64, scratch_operands = 0 : i64, tpu.core_type = #tpu.core_type<tc>, window_params = [{transform_indices = @transform_0, window_bounds = array<i64: 1, 64, 256>}, {pipeline_mode = #tpu.pipeline_mode<synchronous>, transform_indices = @transform_1, window_bounds = array<i64: 4, 64>}, {pipeline_mode = #tpu.pipeline_mode<synchronous>, transform_indices = @transform_2, window_bounds = array<i64: 64, 4>}, {transform_indices = @transform_3, window_bounds = array<i64: 1>}, {transform_indices = @transform_4, window_bounds = array<i64: 1, 64, 256>}]} {
    %c0 = arith.constant 0 : index
    %c0_0 = arith.constant 0 : index
    %c0_1 = arith.constant 0 : index
    %0 = vector.load %arg1[%c0, %c0_0, %c0_1] : memref<1x64x256xf32, #tpu.memory_space<vmem>>, vector<1x64x256xf32>
    %cst = arith.constant dense<0.000000e+00> : vector<1x64xf32>
    %1 = vector.multi_reduction <add>, %0, %cst [2] : vector<1x64x256xf32> to vector<1x64xf32>
    %cst_2 = arith.constant 3.906250e-03 : f32
    %2 = vector.broadcast %cst_2 : f32 to vector<1x64xf32>
    %3 = arith.mulf %1, %2 : vector<1x64xf32>
    %c0_3 = arith.constant 0 : index
    %c0_4 = arith.constant 0 : index
    %4 = vector.load %arg2[%c0_3, %c0_4] : memref<4x64xf32, #tpu.memory_space<vmem>>, vector<4x64xf32>
    %c0_5 = arith.constant 0 : index
    %c0_6 = arith.constant 0 : index
    %5 = vector.load %arg3[%c0_5, %c0_6] : memref<64x4xf32, #tpu.memory_space<vmem>>, vector<64x4xf32>
    %6 = vector.shape_cast %3 : vector<1x64xf32> to vector<1x1x64xf32>
    %7 = vector.shape_cast %4 : vector<4x64xf32> to vector<1x4x64xf32>
    %8 = vector.broadcast %6 : vector<1x1x64xf32> to vector<1x4x64xf32>
    %9 = arith.mulf %8, %7 : vector<1x4x64xf32>
    %cst_7 = arith.constant dense<0.000000e+00> : vector<1x4xf32>
    %10 = vector.multi_reduction <add>, %9, %cst_7 [2] : vector<1x4x64xf32> to vector<1x4xf32>
    %c0_8 = arith.constant 0 : index
    %11 = memref.load %arg4[%c0_8] : memref<1xf32, #tpu.memory_space<smem>>
    %cst_9 = arith.constant 0.000000e+00 : f32
    %12 = vector.broadcast %cst_9 : f32 to vector<1x4xf32>
    %13 = arith.cmpf oge, %10, %12 : vector<1x4xf32>
    %14 = vector.broadcast %11 : f32 to vector<1x4xf32>
    %15 = arith.mulf %14, %10 : vector<1x4xf32>
    %16 = arith.select %13, %10, %15 : vector<1x4xi1>, vector<1x4xf32>
    %17 = vector.shape_cast %16 : vector<1x4xf32> to vector<1x1x4xf32>
    %18 = vector.shape_cast %5 : vector<64x4xf32> to vector<1x64x4xf32>
    %19 = vector.broadcast %17 : vector<1x1x4xf32> to vector<1x64x4xf32>
    %20 = arith.mulf %19, %18 : vector<1x64x4xf32>
    %cst_10 = arith.constant dense<0.000000e+00> : vector<1x64xf32>
    %21 = vector.multi_reduction <add>, %20, %cst_10 [2] : vector<1x64x4xf32> to vector<1x64xf32>
    %22 = arith.negf %21 : vector<1x64xf32>
    %23 = math.exp %22 : vector<1x64xf32>
    %cst_11 = arith.constant 1.000000e+00 : f32
    %24 = vector.broadcast %cst_11 : f32 to vector<1x64xf32>
    %25 = arith.addf %24, %23 : vector<1x64xf32>
    %26 = arith.divf %24, %25 : vector<1x64xf32>
    %27 = vector.shape_cast %26 : vector<1x64xf32> to vector<1x64x1xf32>
    %28 = vector.broadcast %27 : vector<1x64x1xf32> to vector<1x64x256xf32>
    %29 = arith.mulf %0, %28 : vector<1x64x256xf32>
    %c0_12 = arith.constant 0 : index
    %c0_13 = arith.constant 0 : index
    %c0_14 = arith.constant 0 : index
    %30 = vector.load %arg5[%c0_12, %c0_13, %c0_14] : memref<1x64x256xf32, #tpu.memory_space<vmem>>, vector<1x64x256xf32>
    tpu.vector_store %arg5[%c0_12, %c0_13, %c0_14], %29 {strides = array<i32>} : memref<1x64x256xf32, #tpu.memory_space<vmem>>, vector<1x64x256xf32>,
    return
  }
  func.func @transform_0(%arg0: i32) -> (i32, i32, i32) {
    %c0_i32 = arith.constant 0 : i32
    %c0_i32_0 = arith.constant 0 : i32
    %c0_i32_1 = arith.constant 0 : i32
    return %arg0, %c0_i32, %c0_i32_0 : i32, i32, i32
  }
  func.func @transform_1(%arg0: i32) -> (i32, i32) {
    %c0_i32 = arith.constant 0 : i32
    %c0_i32_0 = arith.constant 0 : i32
    %c0_i32_1 = arith.constant 0 : i32
    return %c0_i32, %c0_i32_0 : i32, i32
  }
  func.func @transform_2(%arg0: i32) -> (i32, i32) {
    %c0_i32 = arith.constant 0 : i32
    %c0_i32_0 = arith.constant 0 : i32
    %c0_i32_1 = arith.constant 0 : i32
    return %c0_i32, %c0_i32_0 : i32, i32
  }
  func.func @transform_3(%arg0: i32) -> i32 {
    %c0_i32 = arith.constant 0 : i32
    %c0_i32_0 = arith.constant 0 : i32
    return %c0_i32 : i32
  }
  func.func @transform_4(%arg0: i32) -> (i32, i32, i32) {
    %c0_i32 = arith.constant 0 : i32
    %c0_i32_0 = arith.constant 0 : i32
    %c0_i32_1 = arith.constant 0 : i32
    return %arg0, %c0_i32, %c0_i32_0 : i32, i32, i32
  }
}

</mosaic_0001>

<llo_original>
// kernel: tpu_custom_call.1
$region0: #{tpu_custom_call.1}
  #allocation0 [shape = 'u32[]', space=smem, size = 0x4, offset = 0x4, fixed_abs, tag = 'smem constant byte address 0x4 - core index']
  #allocation1 [shape = 'u32[144,128]{1,0:T(1,128)}', space=vmem, size = 0x12000, scoped, tag = 'internal scratch']
  #allocation2 [shape = 'f32[1]{0:T(128)S(6)}', space=smem, size = 0x200, scoped, tag = 'scoped memory for tpu_custom_call.1']
  %s0 = inlined_call_operand.hbm [shape: f32[2,64,256], index: 0, kind: input, shape index: {}]
  %s1 = inlined_call_operand.vmem [shape: f32[4,64], index: 1, kind: input, shape index: {}]
  %s2 = inlined_call_operand.vmem [shape: f32[64,4], index: 2, kind: input, shape index: {}]
  %s3 = inlined_call_operand.<no memory space> [shape: f32[1], index: 3, kind: input, shape index: {}]
  %s4 = inlined_call_operand.hbm [shape: f32[2,64,256], index: 4, kind: output, shape index: {}]
  %s5 = sld [smem:[#allocation0]]
  $region53: #{tpu_custom_call.1} parent=0
    _
  %s7 = ssub.s32 1, %s5
  %s8 = scalar_select 0, %s7, %s5
  %9 = sst [smem:[#allocation2]] %s3
  $region1: #{tpu_custom_call.1} parent=0
    #allocation3 [shape = 'u8[131072]{0}', space=vmem, size = 0x20000, scoped, tag = 'input window, operand 0']
    #allocation4 [shape = 's32[2]{0}', space=sflag, size = 0x8, scoped, tag = 'scoped memory for tpu_custom_call.1']
    #allocation5 [shape = 's32[2]{0}', space=sflag, size = 0x8, scoped, tag = 'scoped memory for tpu_custom_call.1']
    #allocation6 [shape = 'u8[131072]{0}', space=vmem, size = 0x20000, scoped, tag = 'output window, operand 0']
    %10 = vsyncpa [#allocation4], 0
    %s11 = scalar_lea.sflag [#allocation4], 1
    %12 = vsyncpa %s11, 0
    %13 = vsyncpa [#allocation5], 0
    %s14 = scalar_lea.sflag [#allocation5], 1
    %15 = vsyncpa %s14, 0
    loop: start=0, step=1, limit=4
    $region2: #{tpu_custom_call.1} parent=1 // loop_pre_header
      _
    $region3: #{tpu_custom_call.1} parent=1 // loop_header
      %s17 = sphi 0, %s21
      %p18 = scmp.ge.s32.totalorder %s17, 4
      %s27 = sphi 0, %s29
      %s30 = sphi 0, %s27
      %s31 = sphi 0, %s30
      %s47 = sphi 0, %s31
      %s51 = sphi 0, %s51
      %s53 = sphi 0, %s51
      %s54 = sphi 0, %s53
      %s68 = sphi 0, %s54
      %s72 = sphi 0, %s72
      %s74 = sphi 0, %s72
      %s75 = sphi 0, %s74
      %s89 = sphi 0, %s75
      %s93 = sphi 0, %s93
      %s95 = sphi 0, %s93
      %s96 = sphi 0, %s95
      %s110 = sphi 0, %s96
      %s116 = sphi 0, %s118
      %s119 = sphi 0, %s116
      %s120 = sphi 0, %s119
      %s136 = sphi 0, %s120
    $region4: #{tpu_custom_call.1} parent=1 // loop_header_branch
      %20 = sbr.rel (%p18) target = $region8
    $region5: #{tpu_custom_call.1} parent=1 // loop_body
      %s22 = ssub.s32 %s17, 1
      %s23 = ssub.s32 %s17, 2
      %s24 = sadd.s32 %s17, 1
      %s25 = ssub.s32 %s17, %s24
      %p26 = scmp.eq.s32.totalorder %s25, 0
      %s28 = sadd.s32 %s27, 1
      %s29 = scalar_select %p26, %s27, %s28
      %p32 = pneg %p26
      %p33 = scmp.eq.s32.totalorder %s17, 1
      %p34 = por %p32, %p33
      %p35 = scmp.ne.s32.totalorder %s27, %s30
      %p36 = scmp.eq.s32.totalorder %s17, 0
      %p37 = por %p35, %p36
      %p38 = scmp.ne.s32.totalorder %s27, %s30
      %p39 = scmp.eq.s32.totalorder %s22, 1
      %p40 = por %p38, %p39
      %p41 = scmp.ne.s32.totalorder %s30, %s31
      %p42 = scmp.eq.s32.totalorder %s22, 0
      %p43 = por %p41, %p42
      %p44 = scmp.ne.s32.totalorder %s30, %s31
      %p45 = scmp.eq.s32.totalorder %s23, 1
      %p46 = por %p44, %p45
      %p48 = scmp.ne.s32.totalorder %s31, %s47
      %p49 = scmp.eq.s32.totalorder %s23, 0
      %p50 = por %p48, %p49
      %s52 = sadd.s32 %s51, 1
      %p55 = scmp.eq.s32.totalorder %s17, 1
      %p56 = scmp.ne.s32.totalorder %s51, %s53
      %p57 = scmp.eq.s32.totalorder %s17, 0
      %p58 = por %p56, %p57
      %p59 = scmp.ne.s32.totalorder %s51, %s53
      %p60 = scmp.eq.s32.totalorder %s22, 1
      %p61 = por %p59, %p60
      %p62 = scmp.ne.s32.totalorder %s53, %s54
      %p63 = scmp.eq.s32.totalorder %s22, 0
      %p64 = por %p62, %p63
      %p65 = scmp.ne.s32.totalorder %s53, %s54
      %p66 = scmp.eq.s32.totalorder %s23, 1
      %p67 = por %p65, %p66
      %p69 = scmp.ne.s32.totalorder %s54, %s68
      %p70 = scmp.eq.s32.totalorder %s23, 0
      %p71 = por %p69, %p70
      %s73 = sadd.s32 %s72, 1
      %p76 = scmp.eq.s32.totalorder %s17, 1
      %p77 = scmp.ne.s32.totalorder %s72, %s74
      %p78 = scmp.eq.s32.totalorder %s17, 0
      %p79 = por %p77, %p78
      %p80 = scmp.ne.s32.totalorder %s72, %s74
      %p81 = scmp.eq.s32.totalorder %s22, 1
      %p82 = por %p80, %p81
      %p83 = scmp.ne.s32.totalorder %s74, %s75
      %p84 = scmp.eq.s32.totalorder %s22, 0
      %p85 = por %p83, %p84
      %p86 = scmp.ne.s32.totalorder %s74, %s75
      %p87 = scmp.eq.s32.totalorder %s23, 1
      %p88 = por %p86, %p87
      %p90 = scmp.ne.s32.totalorder %s75, %s89
      %p91 = scmp.eq.s32.totalorder %s23, 0
      %p92 = por %p90, %p91
      %s94 = sadd.s32 %s93, 1
      %p97 = scmp.eq.s32.totalorder %s17, 1
      %p98 = scmp.ne.s32.totalorder %s93, %s95
      %p99 = scmp.eq.s32.totalorder %s17, 0
      %p100 = por %p98, %p99
      %p101 = scmp.ne.s32.totalorder %s93, %s95
      %p102 = scmp.eq.s32.totalorder %s22, 1
      %p103 = por %p101, %p102
      %p104 = scmp.ne.s32.totalorder %s95, %s96
      %p105 = scmp.eq.s32.totalorder %s22, 0
      %p106 = por %p104, %p105
      %p107 = scmp.ne.s32.totalorder %s95, %s96
      %p108 = scmp.eq.s32.totalorder %s23, 1
      %p109 = por %p107, %p108
      %p111 = scmp.ne.s32.totalorder %s96, %s110
      %p112 = scmp.eq.s32.totalorder %s23, 0
      %p113 = por %p111, %p112
      %s114 = ssub.s32 %s17, %s24
      %p115 = scmp.eq.s32.totalorder %s114, 0
      %s117 = sadd.s32 %s116, 1
      %s118 = scalar_select %p115, %s116, %s117
      %p121 = pneg %p115
      %p122 = scmp.eq.s32.totalorder %s17, 1
      %p123 = por %p121, %p122
      %p124 = scmp.ne.s32.totalorder %s116, %s119
      %p125 = scmp.eq.s32.totalorder %s17, 0
      %p126 = por %p124, %p125
      %p127 = scmp.ne.s32.totalorder %s116, %s119
      %p128 = scmp.eq.s32.totalorder %s22, 1
      %p129 = por %p127, %p128
      %p130 = scmp.ne.s32.totalorder %s119, %s120
      %p131 = scmp.eq.s32.totalorder %s22, 0
      %p132 = por %p130, %p131
      %p133 = scmp.ne.s32.totalorder %s119, %s120
      %p134 = scmp.eq.s32.totalorder %s23, 1
      %p135 = por %p133, %p134
      %p137 = scmp.ne.s32.totalorder %s120, %s136
      %p138 = scmp.eq.s32.totalorder %s23, 0
      %p139 = por %p137, %p138
      %p140 = scmp.le.s32.totalorder 1, %s17
      %p141 = scmp.lt.s32.totalorder %s17, 3
      %p142 = pnand %p140, %p141
      %p143 = pneg %p142
      // Predicated region
      $region9: #{tpu_custom_call.1} parent=5 // pred_check
        _
      $region10: #{tpu_custom_call.1} parent=5 // pred_check_branch
        %145 = sbr.rel (%p142) target = $region12
      $region11: #{tpu_custom_call.1} parent=5 // pred_region
        %s146 = ssub.s32 %s17, 1
        // Predicated region
        $region13: #{tpu_custom_call.1} parent=11 // pred_check
          %p147 = pneg %p64
        $region14: #{tpu_custom_call.1} parent=11 // pred_check_branch
          %149 = sbr.rel (%p147) target = $region16
        $region15: #{tpu_custom_call.1} parent=11 // pred_region
          _
        $region16: #{tpu_custom_call.1} parent=11 // pred_fallthru
          _
        // Predicated region
        $region17: #{tpu_custom_call.1} parent=11 // pred_check
          %p150 = pneg %p85
        $region18: #{tpu_custom_call.1} parent=11 // pred_check_branch
          %152 = sbr.rel (%p150) target = $region20
        $region19: #{tpu_custom_call.1} parent=11 // pred_region
          _
        $region20: #{tpu_custom_call.1} parent=11 // pred_fallthru
          _
        // Predicated region
        $region21: #{tpu_custom_call.1} parent=11 // pred_check
          %p153 = pneg %p106
        $region22: #{tpu_custom_call.1} parent=11 // pred_check_branch
          %155 = sbr.rel (%p153) target = $region24
        $region23: #{tpu_custom_call.1} parent=11 // pred_region
          _
        $region24: #{tpu_custom_call.1} parent=11 // pred_fallthru
          _
      $region12: #{tpu_custom_call.1} parent=5 // pred_fallthru
        _
      %p156 = scmp.lt.s32.totalorder %s17, 2
      // Predicated region
      $region25: #{tpu_custom_call.1} parent=5 // pred_check
        %p157 = pneg %p156
      $region26: #{tpu_custom_call.1} parent=5 // pred_check_branch
        %159 = sbr.rel (%p157) target = $region28
      $region27: #{tpu_custom_call.1} parent=5 // pred_region
        // Predicated region
        $region29: #{tpu_custom_call.1} parent=27 // pred_check
          %p160 = pneg %p37
        $region30: #{tpu_custom_call.1} parent=27 // pred_check_branch
          %162 = sbr.rel (%p160) target = $region32
        $region31: #{tpu_custom_call.1} parent=27 // pred_region
          %s163 = sand.u32 %s27, 1
          %s164 = scalar_lea.sflag [#allocation4], %s163
          %s165 = sand.u32 %s27, 1
          %s166 = smul.addr %s165, 128
          %s167 = scalar_lea.vmem [#allocation3], %s166
          %s169 = ssub.s32 2048, 2048
          %170 = vsyncadd %s164, %s169
          %s171 = smul.addr %s17, 16
          %s172 = smul.addr %s171, 128
          %s173 = scalar_lea.hbm %s0, %s172
          %s174 = sshll.u32 %s167, 4
          %s175 = int_to_ptr.vmem [resolvable:$true] %s174
          %180 = dma.hbm_to_vmem [thread:$0]  %s173, 2048, %s175, %s164, 256, 256, 16
        $region32: #{tpu_custom_call.1} parent=27 // pred_fallthru
          _
      $region28: #{tpu_custom_call.1} parent=5 // pred_fallthru
        _
      %p181 = scmp.le.s32.totalorder 1, %s17
      %p182 = scmp.lt.s32.totalorder %s17, 3
      %p183 = pnand %p181, %p182
      %p184 = pneg %p183
      // Predicated region
      $region33: #{tpu_custom_call.1} parent=5 // pred_check
        _
      $region34: #{tpu_custom_call.1} parent=5 // pred_check_branch
        %186 = sbr.rel (%p183) target = $region36
      $region35: #{tpu_custom_call.1} parent=5 // pred_region
        %s187 = ssub.s32 %s17, 1
        %s188 = sand.u32 %s30, 1
        %s189 = scalar_lea.sflag [#allocation4], %s188
        %s190 = sand.u32 %s30, 1
        %s191 = smul.addr %s190, 128
        %s192 = scalar_lea.vmem [#allocation3], %s191
        // Predicated region
        $region37: #{tpu_custom_call.1} parent=35 // pred_check
          %p193 = pneg %p43
        $region38: #{tpu_custom_call.1} parent=35 // pred_check_branch
          %195 = sbr.rel (%p193) target = $region40
        $region39: #{tpu_custom_call.1} parent=35 // pred_region
          %196 = dma.done %s189, 2048
        $region40: #{tpu_custom_call.1} parent=35 // pred_fallthru
          _
        %s197 = sand.u32 %s30, 1
        %s198 = scalar_lea.sflag [#allocation4], %s197
        %s199 = sand.u32 %s30, 1
        %s200 = smul.addr %s199, 128
        %s201 = scalar_lea.vmem [#allocation3], %s200
        %p202 = pneg %p43
        %p203 = pneg %p40
        %p204 = pneg %p64
        %p205 = pneg %p61
        %p206 = pneg %p85
        %p207 = pneg %p82
        %p208 = pneg %p106
        %p209 = pneg %p103
        %p210 = pneg %p132
        %p211 = pneg %p129
        %s212 = sand.u32 %s119, 1
        %s213 = scalar_lea.sflag [#allocation5], %s212
        %s214 = sand.u32 %s119, 1
        %s215 = smul.addr %s214, 128
        %s216 = scalar_lea.vmem [#allocation6], %s215
        %v217 = vld [vmem:[%s192] sm:$0xff]
        %v218 = vld [vmem:[%s192 + $0x8] sm:$0xff]
        %v219 = vld [vmem:[%s192 + $0x10] sm:$0xff]
        %v220 = vld [vmem:[%s192 + $0x18] sm:$0xff]
        %v221 = vld [vmem:[%s192 + $0x20] sm:$0xff]
        %v222 = vld [vmem:[%s192 + $0x28] sm:$0xff]
        %v223 = vld [vmem:[%s192 + $0x30] sm:$0xff]
        %v224 = vld [vmem:[%s192 + $0x38] sm:$0xff]
        %v225 = vld [vmem:[%s192 + $0x40] sm:$0xff]
        %v226 = vld [vmem:[%s192 + $0x48] sm:$0xff]
        %v227 = vld [vmem:[%s192 + $0x50] sm:$0xff]
        %v228 = vld [vmem:[%s192 + $0x58] sm:$0xff]
        %v229 = vld [vmem:[%s192 + $0x60] sm:$0xff]
        %v230 = vld [vmem:[%s192 + $0x68] sm:$0xff]
        %v231 = vld [vmem:[%s192 + $0x70] sm:$0xff]
        %v232 = vld [vmem:[%s192 + $0x78] sm:$0xff]
        %v233 = vadd.f32 %v217, %v218
        %234 = vadd.xlane.f32.xlu0 %v233
        %v235 = vpop.xlane.xlu0 %234
        %v236 = vadd.f32 %v219, %v220
        %237 = vadd.xlane.f32.xlu0 %v236
        %v238 = vpop.xlane.xlu0 %237
        %v239 = vadd.f32 %v221, %v222
        %240 = vadd.xlane.f32.xlu0 %v239
        %v241 = vpop.xlane.xlu0 %240
        %v242 = vadd.f32 %v223, %v224
        %243 = vadd.xlane.f32.xlu0 %v242
        %v244 = vpop.xlane.xlu0 %243
        %v245 = vadd.f32 %v225, %v226
        %246 = vadd.xlane.f32.xlu0 %v245
        %v247 = vpop.xlane.xlu0 %246
        %v248 = vadd.f32 %v227, %v228
        %249 = vadd.xlane.f32.xlu0 %v248
        %v250 = vpop.xlane.xlu0 %249
        %v251 = vadd.f32 %v229, %v230
        %252 = vadd.xlane.f32.xlu0 %v251
        %v253 = vpop.xlane.xlu0 %252
        %v254 = vadd.f32 %v231, %v232
        %255 = vadd.xlane.f32.xlu0 %v254
        %v256 = vpop.xlane.xlu0 %255
        %v257 = vmul.f32 %v235, 0.00390625
        %v258 = vmul.f32 %v238, 0.00390625
        %v259 = vmul.f32 %v241, 0.00390625
        %v260 = vmul.f32 %v244, 0.00390625
        %v261 = vmul.f32 %v247, 0.00390625
        %v262 = vmul.f32 %v250, 0.00390625
        %v263 = vmul.f32 %v253, 0.00390625
        %v264 = vmul.f32 %v256, 0.00390625
        %v265 = vld [vmem:[%s1] sm:$0xf]
        %v266 = vld [vmem:[%s2] sm:$0xff]
        %v267 = vld [vmem:[%s2 + $0x8] sm:$0xff]
        %v268 = vld [vmem:[%s2 + $0x10] sm:$0xff]
        %v269 = vld [vmem:[%s2 + $0x18] sm:$0xff]
        %v270 = vld [vmem:[%s2 + $0x20] sm:$0xff]
        %v271 = vld [vmem:[%s2 + $0x28] sm:$0xff]
        %v272 = vld [vmem:[%s2 + $0x30] sm:$0xff]
        %v273 = vld [vmem:[%s2 + $0x38] sm:$0xff]
        %v275 = vlaneseq
        %v276 = vshrl.u32 %v275, 7
        %v277 = vsub.s32 0, %v276
        %v278 = vrot.slane %v265, %v277
        %280 = vbcast.lane.b32.xlu0 %v278, 256
        %v281 = vpop.permute.xlu0 %280
        %s283 = sor.u32 256, 8
        %284 = vbcast.lane.b32.xlu0 %v278, %s283
        %v285 = vpop.permute.xlu0 %284
        %s287 = sor.u32 256, 16
        %288 = vbcast.lane.b32.xlu0 %v278, %s287
        %v289 = vpop.permute.xlu0 %288
        %s291 = sor.u32 256, 24
        %292 = vbcast.lane.b32.xlu0 %v278, %s291
        %v293 = vpop.permute.xlu0 %292
        %s295 = sor.u32 256, 32
        %296 = vbcast.lane.b32.xlu0 %v278, %s295
        %v297 = vpop.permute.xlu0 %296
        %s299 = sor.u32 256, 40
        %300 = vbcast.lane.b32.xlu0 %v278, %s299
        %v301 = vpop.permute.xlu0 %300
        %s303 = sor.u32 256, 48
        %304 = vbcast.lane.b32.xlu0 %v278, %s303
        %v305 = vpop.permute.xlu0 %304
        %s307 = sor.u32 256, 56
        %308 = vbcast.lane.b32.xlu0 %v278, %s307
        %v309 = vpop.permute.xlu0 %308
        %v310 = vlaneseq
        %v311 = vshrl.u32 %v310, 7
        %v312 = vsub.s32 1, %v311
        %v313 = vrot.slane %v265, %v312
        %315 = vbcast.lane.b32.xlu0 %v313, 256
        %v316 = vpop.permute.xlu0 %315
        %s318 = sor.u32 256, 8
        %319 = vbcast.lane.b32.xlu0 %v313, %s318
        %v320 = vpop.permute.xlu0 %319
        %s322 = sor.u32 256, 16
        %323 = vbcast.lane.b32.xlu0 %v313, %s322
        %v324 = vpop.permute.xlu0 %323
        %s326 = sor.u32 256, 24
        %327 = vbcast.lane.b32.xlu0 %v313, %s326
        %v328 = vpop.permute.xlu0 %327
        %s330 = sor.u32 256, 32
        %331 = vbcast.lane.b32.xlu0 %v313, %s330
        %v332 = vpop.permute.xlu0 %331
        %s334 = sor.u32 256, 40
        %335 = vbcast.lane.b32.xlu0 %v313, %s334
        %v336 = vpop.permute.xlu0 %335
        %s338 = sor.u32 256, 48
        %339 = vbcast.lane.b32.xlu0 %v313, %s338
        %v340 = vpop.permute.xlu0 %339
        %s342 = sor.u32 256, 56
        %343 = vbcast.lane.b32.xlu0 %v313, %s342
        %v344 = vpop.permute.xlu0 %343
        %v345 = vlaneseq
        %v346 = vshrl.u32 %v345, 7
        %v347 = vsub.s32 2, %v346
        %v348 = vrot.slane %v265, %v347
        %350 = vbcast.lane.b32.xlu0 %v348, 256
        %v351 = vpop.permute.xlu0 %350
        %s353 = sor.u32 256, 8
        %354 = vbcast.lane.b32.xlu0 %v348, %s353
        %v355 = vpop.permute.xlu0 %354
        %s357 = sor.u32 256, 16
        %358 = vbcast.lane.b32.xlu0 %v348, %s357
        %v359 = vpop.permute.xlu0 %358
        %s361 = sor.u32 256, 24
        %362 = vbcast.lane.b32.xlu0 %v348, %s361
        %v363 = vpop.permute.xlu0 %362
        %s365 = sor.u32 256, 32
        %366 = vbcast.lane.b32.xlu0 %v348, %s365
        %v367 = vpop.permute.xlu0 %366
        %s369 = sor.u32 256, 40
        %370 = vbcast.lane.b32.xlu0 %v348, %s369
        %v371 = vpop.permute.xlu0 %370
        %s373 = sor.u32 256, 48
        %374 = vbcast.lane.b32.xlu0 %v348, %s373
        %v375 = vpop.permute.xlu0 %374
        %s377 = sor.u32 256, 56
        %378 = vbcast.lane.b32.xlu0 %v348, %s377
        %v379 = vpop.permute.xlu0 %378
        %v380 = vlaneseq
        %v381 = vshrl.u32 %v380, 7
        %v382 = vsub.s32 3, %v381
        %v383 = vrot.slane %v265, %v382
        %385 = vbcast.lane.b32.xlu0 %v383, 256
        %v386 = vpop.permute.xlu0 %385
        %s388 = sor.u32 256, 8
        %389 = vbcast.lane.b32.xlu0 %v383, %s388
        %v390 = vpop.permute.xlu0 %389
        %s392 = sor.u32 256, 16
        %393 = vbcast.lane.b32.xlu0 %v383, %s392
        %v394 = vpop.permute.xlu0 %393
        %s396 = sor.u32 256, 24
        %397 = vbcast.lane.b32.xlu0 %v383, %s396
        %v398 = vpop.permute.xlu0 %397
        %s400 = sor.u32 256, 32
        %401 = vbcast.lane.b32.xlu0 %v383, %s400
        %v402 = vpop.permute.xlu0 %401
        %s404 = sor.u32 256, 40
        %405 = vbcast.lane.b32.xlu0 %v383, %s404
        %v406 = vpop.permute.xlu0 %405
        %s408 = sor.u32 256, 48
        %409 = vbcast.lane.b32.xlu0 %v383, %s408
        %v410 = vpop.permute.xlu0 %409
        %s412 = sor.u32 256, 56
        %413 = vbcast.lane.b32.xlu0 %v383, %s412
        %v414 = vpop.permute.xlu0 %413
        %v447 = vmul.f32 %v257, %v281
        %v448 = vmul.f32 %v258, %v285
        %v449 = vmul.f32 %v259, %v289
        %v450 = vmul.f32 %v260, %v293
        %v451 = vmul.f32 %v261, %v297
        %v452 = vmul.f32 %v262, %v301
        %v453 = vmul.f32 %v263, %v305
        %v454 = vmul.f32 %v264, %v309
        %v455 = vmul.f32 %v257, %v316
        %v456 = vmul.f32 %v258, %v320
        %v457 = vmul.f32 %v259, %v324
        %v458 = vmul.f32 %v260, %v328
        %v459 = vmul.f32 %v261, %v332
        %v460 = vmul.f32 %v262, %v336
        %v461 = vmul.f32 %v263, %v340
        %v462 = vmul.f32 %v264, %v344
        %v463 = vmul.f32 %v257, %v351
        %v464 = vmul.f32 %v258, %v355
        %v465 = vmul.f32 %v259, %v359
        %v466 = vmul.f32 %v260, %v363
        %v467 = vmul.f32 %v261, %v367
        %v468 = vmul.f32 %v262, %v371
        %v469 = vmul.f32 %v263, %v375
        %v470 = vmul.f32 %v264, %v379
        %v471 = vmul.f32 %v257, %v386
        %v472 = vmul.f32 %v258, %v390
        %v473 = vmul.f32 %v259, %v394
        %v474 = vmul.f32 %v260, %v398
        %v475 = vmul.f32 %v261, %v402
        %v476 = vmul.f32 %v262, %v406
        %v477 = vmul.f32 %v263, %v410
        %v478 = vmul.f32 %v264, %v414
        %511 = vset.pattern.permute.xlu0 0
        %512 = vperm.xlu0 %511, %v447
        %v513 = vpop.permute.xlu0 %512
        %514 = vset.pattern.permute.xlu0 0
        %515 = vperm.xlu0 %514, %v448
        %v516 = vpop.permute.xlu0 %515
        %517 = vset.pattern.permute.xlu0 0
        %518 = vperm.xlu0 %517, %v449
        %v519 = vpop.permute.xlu0 %518
        %520 = vset.pattern.permute.xlu0 0
        %521 = vperm.xlu0 %520, %v450
        %v522 = vpop.permute.xlu0 %521
        %523 = vset.pattern.permute.xlu0 0
        %524 = vperm.xlu0 %523, %v451
        %v525 = vpop.permute.xlu0 %524
        %526 = vset.pattern.permute.xlu0 0
        %527 = vperm.xlu0 %526, %v452
        %v528 = vpop.permute.xlu0 %527
        %529 = vset.pattern.permute.xlu0 0
        %530 = vperm.xlu0 %529, %v453
        %v531 = vpop.permute.xlu0 %530
        %532 = vset.pattern.permute.xlu0 0
        %533 = vperm.xlu0 %532, %v454
        %v534 = vpop.permute.xlu0 %533
        %535 = vset.pattern.permute.xlu0 0
        %536 = vperm.xlu0 %535, %v455
        %v537 = vpop.permute.xlu0 %536
        %538 = vset.pattern.permute.xlu0 0
        %539 = vperm.xlu0 %538, %v456
        %v540 = vpop.permute.xlu0 %539
        %541 = vset.pattern.permute.xlu0 0
        %542 = vperm.xlu0 %541, %v457
        %v543 = vpop.permute.xlu0 %542
        %544 = vset.pattern.permute.xlu0 0
        %545 = vperm.xlu0 %544, %v458
        %v546 = vpop.permute.xlu0 %545
        %547 = vset.pattern.permute.xlu0 0
        %548 = vperm.xlu0 %547, %v459
        %v549 = vpop.permute.xlu0 %548
        %550 = vset.pattern.permute.xlu0 0
        %551 = vperm.xlu0 %550, %v460
        %v552 = vpop.permute.xlu0 %551
        %553 = vset.pattern.permute.xlu0 0
        %554 = vperm.xlu0 %553, %v461
        %v555 = vpop.permute.xlu0 %554
        %556 = vset.pattern.permute.xlu0 0
        %557 = vperm.xlu0 %556, %v462
        %v558 = vpop.permute.xlu0 %557
        %559 = vset.pattern.permute.xlu0 0
        %560 = vperm.xlu0 %559, %v463
        %v561 = vpop.permute.xlu0 %560
        %562 = vset.pattern.permute.xlu0 0
        %563 = vperm.xlu0 %562, %v464
        %v564 = vpop.permute.xlu0 %563
        %565 = vset.pattern.permute.xlu0 0
        %566 = vperm.xlu0 %565, %v465
        %v567 = vpop.permute.xlu0 %566
        %568 = vset.pattern.permute.xlu0 0
        %569 = vperm.xlu0 %568, %v466
        %v570 = vpop.permute.xlu0 %569
        %571 = vset.pattern.permute.xlu0 0
        %572 = vperm.xlu0 %571, %v467
        %v573 = vpop.permute.xlu0 %572
        %574 = vset.pattern.permute.xlu0 0
        %575 = vperm.xlu0 %574, %v468
        %v576 = vpop.permute.xlu0 %575
        %577 = vset.pattern.permute.xlu0 0
        %578 = vperm.xlu0 %577, %v469
        %v579 = vpop.permute.xlu0 %578
        %580 = vset.pattern.permute.xlu0 0
        %581 = vperm.xlu0 %580, %v470
        %v582 = vpop.permute.xlu0 %581
        %583 = vset.pattern.permute.xlu0 0
        %584 = vperm.xlu0 %583, %v471
        %v585 = vpop.permute.xlu0 %584
        %586 = vset.pattern.permute.xlu0 0
        %587 = vperm.xlu0 %586, %v472
        %v588 = vpop.permute.xlu0 %587
        %589 = vset.pattern.permute.xlu0 0
        %590 = vperm.xlu0 %589, %v473
        %v591 = vpop.permute.xlu0 %590
        %592 = vset.pattern.permute.xlu0 0
        %593 = vperm.xlu0 %592, %v474
        %v594 = vpop.permute.xlu0 %593
        %595 = vset.pattern.permute.xlu0 0
        %596 = vperm.xlu0 %595, %v475
        %v597 = vpop.permute.xlu0 %596
        %598 = vset.pattern.permute.xlu0 0
        %599 = vperm.xlu0 %598, %v476
        %v600 = vpop.permute.xlu0 %599
        %601 = vset.pattern.permute.xlu0 0
        %602 = vperm.xlu0 %601, %v477
        %v603 = vpop.permute.xlu0 %602
        %604 = vset.pattern.permute.xlu0 0
        %605 = vperm.xlu0 %604, %v478
        %v606 = vpop.permute.xlu0 %605
        %v607 = vlaneseq
        %v608 = vand.u32 %v607, 127
        %v609 = vlaneseq
        %v610 = vshrl.u32 %v609, 7
        %v611 = vsub.s32 %v608, %v610
        %v612 = vrot.slane %v513, %v611
        %v613 = vadd.s32 %v608, 4294967288
        %v614 = vlaneseq
        %v615 = vshrl.u32 %v614, 7
        %v616 = vsub.s32 %v613, %v615
        %v617 = vrot.slane %v516, %v616
        %vm618 = vcmask 130112
        %v619 = vsel %vm618, %v617, %v612
        %v620 = vadd.s32 %v608, 4294967280
        %v621 = vlaneseq
        %v622 = vshrl.u32 %v621, 7
        %v623 = vsub.s32 %v620, %v622
        %v624 = vrot.slane %v519, %v623
        %vm625 = vcmask 195712
        %v626 = vsel %vm625, %v624, %v619
        %v627 = vadd.s32 %v608, 4294967272
        %v628 = vlaneseq
        %v629 = vshrl.u32 %v628, 7
        %v630 = vsub.s32 %v627, %v629
        %v631 = vrot.slane %v522, %v630
        %vm632 = vcmask 261312
        %v633 = vsel %vm632, %v631, %v626
        %v634 = vadd.s32 %v608, 4294967264
        %v635 = vlaneseq
        %v636 = vshrl.u32 %v635, 7
        %v637 = vsub.s32 %v634, %v636
        %v638 = vrot.slane %v525, %v637
        %vm639 = vcmask 326912
        %v640 = vsel %vm639, %v638, %v633
        %v641 = vadd.s32 %v608, 4294967256
        %v642 = vlaneseq
        %v643 = vshrl.u32 %v642, 7
        %v644 = vsub.s32 %v641, %v643
        %v645 = vrot.slane %v528, %v644
        %vm646 = vcmask 392512
        %v647 = vsel %vm646, %v645, %v640
        %v648 = vadd.s32 %v608, 4294967248
        %v649 = vlaneseq
        %v650 = vshrl.u32 %v649, 7
        %v651 = vsub.s32 %v648, %v650
        %v652 = vrot.slane %v531, %v651
        %vm653 = vcmask 458112
        %v654 = vsel %vm653, %v652, %v647
        %v655 = vadd.s32 %v608, 4294967240
        %v656 = vlaneseq
        %v657 = vshrl.u32 %v656, 7
        %v658 = vsub.s32 %v655, %v657
        %v659 = vrot.slane %v534, %v658
        %vm660 = vcmask 523712
        %v661 = vsel %vm660, %v659, %v654
        %v662 = vlaneseq
        %v663 = vshrl.u32 %v662, 7
        %v664 = vsub.s32 %v608, %v663
        %v665 = vrot.slane %v537, %v664
        %v666 = vlaneseq
        %v667 = vshrl.u32 %v666, 7
        %v668 = vsub.s32 %v613, %v667
        %v669 = vrot.slane %v540, %v668
        %v670 = vsel %vm618, %v669, %v665
        %v671 = vlaneseq
        %v672 = vshrl.u32 %v671, 7
        %v673 = vsub.s32 %v620, %v672
        %v674 = vrot.slane %v543, %v673
        %v675 = vsel %vm625, %v674, %v670
        %v676 = vlaneseq
        %v677 = vshrl.u32 %v676, 7
        %v678 = vsub.s32 %v627, %v677
        %v679 = vrot.slane %v546, %v678
        %v680 = vsel %vm632, %v679, %v675
        %v681 = vlaneseq
        %v682 = vshrl.u32 %v681, 7
        %v683 = vsub.s32 %v634, %v682
        %v684 = vrot.slane %v549, %v683
        %v685 = vsel %vm639, %v684, %v680
        %v686 = vlaneseq
        %v687 = vshrl.u32 %v686, 7
        %v688 = vsub.s32 %v641, %v687
        %v689 = vrot.slane %v552, %v688
        %v690 = vsel %vm646, %v689, %v685
        %v691 = vlaneseq
        %v692 = vshrl.u32 %v691, 7
        %v693 = vsub.s32 %v648, %v692
        %v694 = vrot.slane %v555, %v693
        %v695 = vsel %vm653, %v694, %v690
        %v696 = vlaneseq
        %v697 = vshrl.u32 %v696, 7
        %v698 = vsub.s32 %v655, %v697
        %v699 = vrot.slane %v558, %v698
        %v700 = vsel %vm660, %v699, %v695
        %v701 = vlaneseq
        %v702 = vshrl.u32 %v701, 7
        %v703 = vsub.s32 %v608, %v702
        %v704 = vrot.slane %v561, %v703
        %v705 = vlaneseq
        %v706 = vshrl.u32 %v705, 7
        %v707 = vsub.s32 %v613, %v706
        %v708 = vrot.slane %v564, %v707
        %v709 = vsel %vm618, %v708, %v704
        %v710 = vlaneseq
        %v711 = vshrl.u32 %v710, 7
        %v712 = vsub.s32 %v620, %v711
        %v713 = vrot.slane %v567, %v712
        %v714 = vsel %vm625, %v713, %v709
        %v715 = vlaneseq
        %v716 = vshrl.u32 %v715, 7
        %v717 = vsub.s32 %v627, %v716
        %v718 = vrot.slane %v570, %v717
        %v719 = vsel %vm632, %v718, %v714
        %v720 = vlaneseq
        %v721 = vshrl.u32 %v720, 7
        %v722 = vsub.s32 %v634, %v721
        %v723 = vrot.slane %v573, %v722
        %v724 = vsel %vm639, %v723, %v719
        %v725 = vlaneseq
        %v726 = vshrl.u32 %v725, 7
        %v727 = vsub.s32 %v641, %v726
        %v728 = vrot.slane %v576, %v727
        %v729 = vsel %vm646, %v728, %v724
        %v730 = vlaneseq
        %v731 = vshrl.u32 %v730, 7
        %v732 = vsub.s32 %v648, %v731
        %v733 = vrot.slane %v579, %v732
        %v734 = vsel %vm653, %v733, %v729
        %v735 = vlaneseq
        %v736 = vshrl.u32 %v735, 7
        %v737 = vsub.s32 %v655, %v736
        %v738 = vrot.slane %v582, %v737
        %v739 = vsel %vm660, %v738, %v734
        %v740 = vlaneseq
        %v741 = vshrl.u32 %v740, 7
        %v742 = vsub.s32 %v608, %v741
        %v743 = vrot.slane %v585, %v742
        %v744 = vlaneseq
        %v745 = vshrl.u32 %v744, 7
        %v746 = vsub.s32 %v613, %v745
        %v747 = vrot.slane %v588, %v746
        %v748 = vsel %vm618, %v747, %v743
        %v749 = vlaneseq
        %v750 = vshrl.u32 %v749, 7
        %v751 = vsub.s32 %v620, %v750
        %v752 = vrot.slane %v591, %v751
        %v753 = vsel %vm625, %v752, %v748
        %v754 = vlaneseq
        %v755 = vshrl.u32 %v754, 7
        %v756 = vsub.s32 %v627, %v755
        %v757 = vrot.slane %v594, %v756
        %v758 = vsel %vm632, %v757, %v753
        %v759 = vlaneseq
        %v760 = vshrl.u32 %v759, 7
        %v761 = vsub.s32 %v634, %v760
        %v762 = vrot.slane %v597, %v761
        %v763 = vsel %vm639, %v762, %v758
        %v764 = vlaneseq
        %v765 = vshrl.u32 %v764, 7
        %v766 = vsub.s32 %v641, %v765
        %v767 = vrot.slane %v600, %v766
        %v768 = vsel %vm646, %v767, %v763
        %v769 = vlaneseq
        %v770 = vshrl.u32 %v769, 7
        %v771 = vsub.s32 %v648, %v770
        %v772 = vrot.slane %v603, %v771
        %v773 = vsel %vm653, %v772, %v768
        %v774 = vlaneseq
        %v775 = vshrl.u32 %v774, 7
        %v776 = vsub.s32 %v655, %v775
        %v777 = vrot.slane %v606, %v776
        %v778 = vsel %vm660, %v777, %v773
        %vm779 = vcmask 1041409
        %v780 = vsel %vm779, %v700, %v661
        %vm781 = vcmask 1042434
        %v782 = vsel %vm781, %v739, %v780
        %vm783 = vcmask 1043459
        %v784 = vsel %vm783, %v778, %v782
        %vm786 = vcmask 519168
        %v787 = vsel %vm786, %v784, 0.0
        %788 = vadd.xlane.f32.xlu0 %v787
        %v789 = vpop.xlane.xlu0 %788
        %s790 = sld [smem:[#allocation2]]
        %vm791 = vcmp.ge.f32.partialorder %v789, 0.0
        %v792 = vstv %s790
        %v793 = vmul.f32 %v792, %v789
        %v794 = vsel %vm791, %v789, %v793
        %v803 = vlaneseq
        %v804 = vshrl.u32 %v803, 7
        %v805 = vsub.s32 0, %v804
        %v806 = vrot.slane %v266, %v805
        %808 = vbcast.lane.b32.xlu0 %v806, 256
        %v809 = vpop.permute.xlu0 %808
        %v810 = vlaneseq
        %v811 = vshrl.u32 %v810, 7
        %v812 = vsub.s32 1, %v811
        %v813 = vrot.slane %v266, %v812
        %815 = vbcast.lane.b32.xlu0 %v813, 256
        %v816 = vpop.permute.xlu0 %815
        %v817 = vlaneseq
        %v818 = vshrl.u32 %v817, 7
        %v819 = vsub.s32 2, %v818
        %v820 = vrot.slane %v266, %v819
        %822 = vbcast.lane.b32.xlu0 %v820, 256
        %v823 = vpop.permute.xlu0 %822
        %v824 = vlaneseq
        %v825 = vshrl.u32 %v824, 7
        %v826 = vsub.s32 3, %v825
        %v827 = vrot.slane %v266, %v826
        %829 = vbcast.lane.b32.xlu0 %v827, 256
        %v830 = vpop.permute.xlu0 %829
        %v831 = vlaneseq
        %v832 = vshrl.u32 %v831, 7
        %v833 = vsub.s32 4, %v832
        %v834 = vrot.slane %v266, %v833
        %836 = vbcast.lane.b32.xlu0 %v834, 256
        %v837 = vpop.permute.xlu0 %836
        %v838 = vlaneseq
        %v839 = vshrl.u32 %v838, 7
        %v840 = vsub.s32 5, %v839
        %v841 = vrot.slane %v266, %v840
        %843 = vbcast.lane.b32.xlu0 %v841, 256
        %v844 = vpop.permute.xlu0 %843
        %v845 = vlaneseq
        %v846 = vshrl.u32 %v845, 7
        %v847 = vsub.s32 6, %v846
        %v848 = vrot.slane %v266, %v847
        %850 = vbcast.lane.b32.xlu0 %v848, 256
        %v851 = vpop.permute.xlu0 %850
        %v852 = vlaneseq
        %v853 = vshrl.u32 %v852, 7
        %v854 = vsub.s32 7, %v853
        %v855 = vrot.slane %v266, %v854
        %857 = vbcast.lane.b32.xlu0 %v855, 256
        %v858 = vpop.permute.xlu0 %857
        %v859 = vlaneseq
        %v860 = vshrl.u32 %v859, 7
        %v861 = vsub.s32 0, %v860
        %v862 = vrot.slane %v267, %v861
        %864 = vbcast.lane.b32.xlu0 %v862, 256
        %v865 = vpop.permute.xlu0 %864
        %v866 = vlaneseq
        %v867 = vshrl.u32 %v866, 7
        %v868 = vsub.s32 1, %v867
        %v869 = vrot.slane %v267, %v868
        %871 = vbcast.lane.b32.xlu0 %v869, 256
        %v872 = vpop.permute.xlu0 %871
        %v873 = vlaneseq
        %v874 = vshrl.u32 %v873, 7
        %v875 = vsub.s32 2, %v874
        %v876 = vrot.slane %v267, %v875
        %878 = vbcast.lane.b32.xlu0 %v876, 256
        %v879 = vpop.permute.xlu0 %878
        %v880 = vlaneseq
        %v881 = vshrl.u32 %v880, 7
        %v882 = vsub.s32 3, %v881
        %v883 = vrot.slane %v267, %v882
        %885 = vbcast.lane.b32.xlu0 %v883, 256
        %v886 = vpop.permute.xlu0 %885
        %v887 = vlaneseq
        %v888 = vshrl.u32 %v887, 7
        %v889 = vsub.s32 4, %v888
        %v890 = vrot.slane %v267, %v889
        %892 = vbcast.lane.b32.xlu0 %v890, 256
        %v893 = vpop.permute.xlu0 %892
        %v894 = vlaneseq
        %v895 = vshrl.u32 %v894, 7
        %v896 = vsub.s32 5, %v895
        %v897 = vrot.slane %v267, %v896
        %899 = vbcast.lane.b32.xlu0 %v897, 256
        %v900 = vpop.permute.xlu0 %899
        %v901 = vlaneseq
        %v902 = vshrl.u32 %v901, 7
        %v903 = vsub.s32 6, %v902
        %v904 = vrot.slane %v267, %v903
        %906 = vbcast.lane.b32.xlu0 %v904, 256
        %v907 = vpop.permute.xlu0 %906
        %v908 = vlaneseq
        %v909 = vshrl.u32 %v908, 7
        %v910 = vsub.s32 7, %v909
        %v911 = vrot.slane %v267, %v910
        %913 = vbcast.lane.b32.xlu0 %v911, 256
        %v914 = vpop.permute.xlu0 %913
        %v915 = vlaneseq
        %v916 = vshrl.u32 %v915, 7
        %v917 = vsub.s32 0, %v916
        %v918 = vrot.slane %v268, %v917
        %920 = vbcast.lane.b32.xlu0 %v918, 256
        %v921 = vpop.permute.xlu0 %920
        %v922 = vlaneseq
        %v923 = vshrl.u32 %v922, 7
        %v924 = vsub.s32 1, %v923
        %v925 = vrot.slane %v268, %v924
        %927 = vbcast.lane.b32.xlu0 %v925, 256
        %v928 = vpop.permute.xlu0 %927
        %v929 = vlaneseq
        %v930 = vshrl.u32 %v929, 7
        %v931 = vsub.s32 2, %v930
        %v932 = vrot.slane %v268, %v931
        %934 = vbcast.lane.b32.xlu0 %v932, 256
        %v935 = vpop.permute.xlu0 %934
        %v936 = vlaneseq
        %v937 = vshrl.u32 %v936, 7
        %v938 = vsub.s32 3, %v937
        %v939 = vrot.slane %v268, %v938
        %941 = vbcast.lane.b32.xlu0 %v939, 256
        %v942 = vpop.permute.xlu0 %941
        %v943 = vlaneseq
        %v944 = vshrl.u32 %v943, 7
        %v945 = vsub.s32 4, %v944
        %v946 = vrot.slane %v268, %v945
        %948 = vbcast.lane.b32.xlu0 %v946, 256
        %v949 = vpop.permute.xlu0 %948
        %v950 = vlaneseq
        %v951 = vshrl.u32 %v950, 7
        %v952 = vsub.s32 5, %v951
        %v953 = vrot.slane %v268, %v952
        %955 = vbcast.lane.b32.xlu0 %v953, 256
        %v956 = vpop.permute.xlu0 %955
        %v957 = vlaneseq
        %v958 = vshrl.u32 %v957, 7
        %v959 = vsub.s32 6, %v958
        %v960 = vrot.slane %v268, %v959
        %962 = vbcast.lane.b32.xlu0 %v960, 256
        %v963 = vpop.permute.xlu0 %962
        %v964 = vlaneseq
        %v965 = vshrl.u32 %v964, 7
        %v966 = vsub.s32 7, %v965
        %v967 = vrot.slane %v268, %v966
        %969 = vbcast.lane.b32.xlu0 %v967, 256
        %v970 = vpop.permute.xlu0 %969
        %v971 = vlaneseq
        %v972 = vshrl.u32 %v971, 7
        %v973 = vsub.s32 0, %v972
        %v974 = vrot.slane %v269, %v973
        %976 = vbcast.lane.b32.xlu0 %v974, 256
        %v977 = vpop.permute.xlu0 %976
        %v978 = vlaneseq
        %v979 = vshrl.u32 %v978, 7
        %v980 = vsub.s32 1, %v979
        %v981 = vrot.slane %v269, %v980
        %983 = vbcast.lane.b32.xlu0 %v981, 256
        %v984 = vpop.permute.xlu0 %983
        %v985 = vlaneseq
        %v986 = vshrl.u32 %v985, 7
        %v987 = vsub.s32 2, %v986
        %v988 = vrot.slane %v269, %v987
        %990 = vbcast.lane.b32.xlu0 %v988, 256
        %v991 = vpop.permute.xlu0 %990
        %v992 = vlaneseq
        %v993 = vshrl.u32 %v992, 7
        %v994 = vsub.s32 3, %v993
        %v995 = vrot.slane %v269, %v994
        %997 = vbcast.lane.b32.xlu0 %v995, 256
        %v998 = vpop.permute.xlu0 %997
        %v999 = vlaneseq
        %v1000 = vshrl.u32 %v999, 7
        %v1001 = vsub.s32 4, %v1000
        %v1002 = vrot.slane %v269, %v1001
        %1004 = vbcast.lane.b32.xlu0 %v1002, 256
        %v1005 = vpop.permute.xlu0 %1004
        %v1006 = vlaneseq
        %v1007 = vshrl.u32 %v1006, 7
        %v1008 = vsub.s32 5, %v1007
        %v1009 = vrot.slane %v269, %v1008
        %1011 = vbcast.lane.b32.xlu0 %v1009, 256
        %v1012 = vpop.permute.xlu0 %1011
        %v1013 = vlaneseq
        %v1014 = vshrl.u32 %v1013, 7
        %v1015 = vsub.s32 6, %v1014
        %v1016 = vrot.slane %v269, %v1015
        %1018 = vbcast.lane.b32.xlu0 %v1016, 256
        %v1019 = vpop.permute.xlu0 %1018
        %v1020 = vlaneseq
        %v1021 = vshrl.u32 %v1020, 7
        %v1022 = vsub.s32 7, %v1021
        %v1023 = vrot.slane %v269, %v1022
        %1025 = vbcast.lane.b32.xlu0 %v1023, 256
        %v1026 = vpop.permute.xlu0 %1025
        %v1027 = vlaneseq
        %v1028 = vshrl.u32 %v1027, 7
        %v1029 = vsub.s32 0, %v1028
        %v1030 = vrot.slane %v270, %v1029
        %1032 = vbcast.lane.b32.xlu0 %v1030, 256
        %v1033 = vpop.permute.xlu0 %1032
        %v1034 = vlaneseq
        %v1035 = vshrl.u32 %v1034, 7
        %v1036 = vsub.s32 1, %v1035
        %v1037 = vrot.slane %v270, %v1036
        %1039 = vbcast.lane.b32.xlu0 %v1037, 256
        %v1040 = vpop.permute.xlu0 %1039
        %v1041 = vlaneseq
        %v1042 = vshrl.u32 %v1041, 7
        %v1043 = vsub.s32 2, %v1042
        %v1044 = vrot.slane %v270, %v1043
        %1046 = vbcast.lane.b32.xlu0 %v1044, 256
        %v1047 = vpop.permute.xlu0 %1046
        %v1048 = vlaneseq
        %v1049 = vshrl.u32 %v1048, 7
        %v1050 = vsub.s32 3, %v1049
        %v1051 = vrot.slane %v270, %v1050
        %1053 = vbcast.lane.b32.xlu0 %v1051, 256
        %v1054 = vpop.permute.xlu0 %1053
        %v1055 = vlaneseq
        %v1056 = vshrl.u32 %v1055, 7
        %v1057 = vsub.s32 4, %v1056
        %v1058 = vrot.slane %v270, %v1057
        %1060 = vbcast.lane.b32.xlu0 %v1058, 256
        %v1061 = vpop.permute.xlu0 %1060
        %v1062 = vlaneseq
        %v1063 = vshrl.u32 %v1062, 7
        %v1064 = vsub.s32 5, %v1063
        %v1065 = vrot.slane %v270, %v1064
        %1067 = vbcast.lane.b32.xlu0 %v1065, 256
        %v1068 = vpop.permute.xlu0 %1067
        %v1069 = vlaneseq
        %v1070 = vshrl.u32 %v1069, 7
        %v1071 = vsub.s32 6, %v1070
        %v1072 = vrot.slane %v270, %v1071
        %1074 = vbcast.lane.b32.xlu0 %v1072, 256
        %v1075 = vpop.permute.xlu0 %1074
        %v1076 = vlaneseq
        %v1077 = vshrl.u32 %v1076, 7
        %v1078 = vsub.s32 7, %v1077
        %v1079 = vrot.slane %v270, %v1078
        %1081 = vbcast.lane.b32.xlu0 %v1079, 256
        %v1082 = vpop.permute.xlu0 %1081
        %v1083 = vlaneseq
        %v1084 = vshrl.u32 %v1083, 7
        %v1085 = vsub.s32 0, %v1084
        %v1086 = vrot.slane %v271, %v1085
        %1088 = vbcast.lane.b32.xlu0 %v1086, 256
        %v1089 = vpop.permute.xlu0 %1088
        %v1090 = vlaneseq
        %v1091 = vshrl.u32 %v1090, 7
        %v1092 = vsub.s32 1, %v1091
        %v1093 = vrot.slane %v271, %v1092
        %1095 = vbcast.lane.b32.xlu0 %v1093, 256
        %v1096 = vpop.permute.xlu0 %1095
        %v1097 = vlaneseq
        %v1098 = vshrl.u32 %v1097, 7
        %v1099 = vsub.s32 2, %v1098
        %v1100 = vrot.slane %v271, %v1099
        %1102 = vbcast.lane.b32.xlu0 %v1100, 256
        %v1103 = vpop.permute.xlu0 %1102
        %v1104 = vlaneseq
        %v1105 = vshrl.u32 %v1104, 7
        %v1106 = vsub.s32 3, %v1105
        %v1107 = vrot.slane %v271, %v1106
        %1109 = vbcast.lane.b32.xlu0 %v1107, 256
        %v1110 = vpop.permute.xlu0 %1109
        %v1111 = vlaneseq
        %v1112 = vshrl.u32 %v1111, 7
        %v1113 = vsub.s32 4, %v1112
        %v1114 = vrot.slane %v271, %v1113
        %1116 = vbcast.lane.b32.xlu0 %v1114, 256
        %v1117 = vpop.permute.xlu0 %1116
        %v1118 = vlaneseq
        %v1119 = vshrl.u32 %v1118, 7
        %v1120 = vsub.s32 5, %v1119
        %v1121 = vrot.slane %v271, %v1120
        %1123 = vbcast.lane.b32.xlu0 %v1121, 256
        %v1124 = vpop.permute.xlu0 %1123
        %v1125 = vlaneseq
        %v1126 = vshrl.u32 %v1125, 7
        %v1127 = vsub.s32 6, %v1126
        %v1128 = vrot.slane %v271, %v1127
        %1130 = vbcast.lane.b32.xlu0 %v1128, 256
        %v1131 = vpop.permute.xlu0 %1130
        %v1132 = vlaneseq
        %v1133 = vshrl.u32 %v1132, 7
        %v1134 = vsub.s32 7, %v1133
        %v1135 = vrot.slane %v271, %v1134
        %1137 = vbcast.lane.b32.xlu0 %v1135, 256
        %v1138 = vpop.permute.xlu0 %1137
        %v1139 = vlaneseq
        %v1140 = vshrl.u32 %v1139, 7
        %v1141 = vsub.s32 0, %v1140
        %v1142 = vrot.slane %v272, %v1141
        %1144 = vbcast.lane.b32.xlu0 %v1142, 256
        %v1145 = vpop.permute.xlu0 %1144
        %v1146 = vlaneseq
        %v1147 = vshrl.u32 %v1146, 7
        %v1148 = vsub.s32 1, %v1147
        %v1149 = vrot.slane %v272, %v1148
        %1151 = vbcast.lane.b32.xlu0 %v1149, 256
        %v1152 = vpop.permute.xlu0 %1151
        %v1153 = vlaneseq
        %v1154 = vshrl.u32 %v1153, 7
        %v1155 = vsub.s32 2, %v1154
        %v1156 = vrot.slane %v272, %v1155
        %1158 = vbcast.lane.b32.xlu0 %v1156, 256
        %v1159 = vpop.permute.xlu0 %1158
        %v1160 = vlaneseq
        %v1161 = vshrl.u32 %v1160, 7
        %v1162 = vsub.s32 3, %v1161
        %v1163 = vrot.slane %v272, %v1162
        %1165 = vbcast.lane.b32.xlu0 %v1163, 256
        %v1166 = vpop.permute.xlu0 %1165
        %v1167 = vlaneseq
        %v1168 = vshrl.u32 %v1167, 7
        %v1169 = vsub.s32 4, %v1168
        %v1170 = vrot.slane %v272, %v1169
        %1172 = vbcast.lane.b32.xlu0 %v1170, 256
        %v1173 = vpop.permute.xlu0 %1172
        %v1174 = vlaneseq
        %v1175 = vshrl.u32 %v1174, 7
        %v1176 = vsub.s32 5, %v1175
        %v1177 = vrot.slane %v272, %v1176
        %1179 = vbcast.lane.b32.xlu0 %v1177, 256
        %v1180 = vpop.permute.xlu0 %1179
        %v1181 = vlaneseq
        %v1182 = vshrl.u32 %v1181, 7
        %v1183 = vsub.s32 6, %v1182
        %v1184 = vrot.slane %v272, %v1183
        %1186 = vbcast.lane.b32.xlu0 %v1184, 256
        %v1187 = vpop.permute.xlu0 %1186
        %v1188 = vlaneseq
        %v1189 = vshrl.u32 %v1188, 7
        %v1190 = vsub.s32 7, %v1189
        %v1191 = vrot.slane %v272, %v1190
        %1193 = vbcast.lane.b32.xlu0 %v1191, 256
        %v1194 = vpop.permute.xlu0 %1193
        %v1195 = vlaneseq
        %v1196 = vshrl.u32 %v1195, 7
        %v1197 = vsub.s32 0, %v1196
        %v1198 = vrot.slane %v273, %v1197
        %1200 = vbcast.lane.b32.xlu0 %v1198, 256
        %v1201 = vpop.permute.xlu0 %1200
        %v1202 = vlaneseq
        %v1203 = vshrl.u32 %v1202, 7
        %v1204 = vsub.s32 1, %v1203
        %v1205 = vrot.slane %v273, %v1204
        %1207 = vbcast.lane.b32.xlu0 %v1205, 256
        %v1208 = vpop.permute.xlu0 %1207
        %v1209 = vlaneseq
        %v1210 = vshrl.u32 %v1209, 7
        %v1211 = vsub.s32 2, %v1210
        %v1212 = vrot.slane %v273, %v1211
        %1214 = vbcast.lane.b32.xlu0 %v1212, 256
        %v1215 = vpop.permute.xlu0 %1214
        %v1216 = vlaneseq
        %v1217 = vshrl.u32 %v1216, 7
        %v1218 = vsub.s32 3, %v1217
        %v1219 = vrot.slane %v273, %v1218
        %1221 = vbcast.lane.b32.xlu0 %v1219, 256
        %v1222 = vpop.permute.xlu0 %1221
        %v1223 = vlaneseq
        %v1224 = vshrl.u32 %v1223, 7
        %v1225 = vsub.s32 4, %v1224
        %v1226 = vrot.slane %v273, %v1225
        %1228 = vbcast.lane.b32.xlu0 %v1226, 256
        %v1229 = vpop.permute.xlu0 %1228
        %v1230 = vlaneseq
        %v1231 = vshrl.u32 %v1230, 7
        %v1232 = vsub.s32 5, %v1231
        %v1233 = vrot.slane %v273, %v1232
        %1235 = vbcast.lane.b32.xlu0 %v1233, 256
        %v1236 = vpop.permute.xlu0 %1235
        %v1237 = vlaneseq
        %v1238 = vshrl.u32 %v1237, 7
        %v1239 = vsub.s32 6, %v1238
        %v1240 = vrot.slane %v273, %v1239
        %1242 = vbcast.lane.b32.xlu0 %v1240, 256
        %v1243 = vpop.permute.xlu0 %1242
        %v1244 = vlaneseq
        %v1245 = vshrl.u32 %v1244, 7
        %v1246 = vsub.s32 7, %v1245
        %v1247 = vrot.slane %v273, %v1246
        %1249 = vbcast.lane.b32.xlu0 %v1247, 256
        %v1250 = vpop.permute.xlu0 %1249
        %v1315 = vmul.f32 %v794, %v809
        %v1316 = vmul.f32 %v794, %v816
        %v1317 = vmul.f32 %v794, %v823
        %v1318 = vmul.f32 %v794, %v830
        %v1319 = vmul.f32 %v794, %v837
        %v1320 = vmul.f32 %v794, %v844
        %v1321 = vmul.f32 %v794, %v851
        %v1322 = vmul.f32 %v794, %v858
        %v1323 = vmul.f32 %v794, %v865
        %v1324 = vmul.f32 %v794, %v872
        %v1325 = vmul.f32 %v794, %v879
        %v1326 = vmul.f32 %v794, %v886
        %v1327 = vmul.f32 %v794, %v893
        %v1328 = vmul.f32 %v794, %v900
        %v1329 = vmul.f32 %v794, %v907
        %v1330 = vmul.f32 %v794, %v914
        %v1331 = vmul.f32 %v794, %v921
        %v1332 = vmul.f32 %v794, %v928
        %v1333 = vmul.f32 %v794, %v935
        %v1334 = vmul.f32 %v794, %v942
        %v1335 = vmul.f32 %v794, %v949
        %v1336 = vmul.f32 %v794, %v956
        %v1337 = vmul.f32 %v794, %v963
        %v1338 = vmul.f32 %v794, %v970
        %v1339 = vmul.f32 %v794, %v977
        %v1340 = vmul.f32 %v794, %v984
        %v1341 = vmul.f32 %v794, %v991
        %v1342 = vmul.f32 %v794, %v998
        %v1343 = vmul.f32 %v794, %v1005
        %v1344 = vmul.f32 %v794, %v1012
        %v1345 = vmul.f32 %v794, %v1019
        %v1346 = vmul.f32 %v794, %v1026
        %v1347 = vmul.f32 %v794, %v1033
        %v1348 = vmul.f32 %v794, %v1040
        %v1349 = vmul.f32 %v794, %v1047
        %v1350 = vmul.f32 %v794, %v1054
        %v1351 = vmul.f32 %v794, %v1061
        %v1352 = vmul.f32 %v794, %v1068
        %v1353 = vmul.f32 %v794, %v1075
        %v1354 = vmul.f32 %v794, %v1082
        %v1355 = vmul.f32 %v794, %v1089
        %v1356 = vmul.f32 %v794, %v1096
        %v1357 = vmul.f32 %v794, %v1103
        %v1358 = vmul.f32 %v794, %v1110
        %v1359 = vmul.f32 %v794, %v1117
        %v1360 = vmul.f32 %v794, %v1124
        %v1361 = vmul.f32 %v794, %v1131
        %v1362 = vmul.f32 %v794, %v1138
        %v1363 = vmul.f32 %v794, %v1145
        %v1364 = vmul.f32 %v794, %v1152
        %v1365 = vmul.f32 %v794, %v1159
        %v1366 = vmul.f32 %v794, %v1166
        %v1367 = vmul.f32 %v794, %v1173
        %v1368 = vmul.f32 %v794, %v1180
        %v1369 = vmul.f32 %v794, %v1187
        %v1370 = vmul.f32 %v794, %v1194
        %v1371 = vmul.f32 %v794, %v1201
        %v1372 = vmul.f32 %v794, %v1208
        %v1373 = vmul.f32 %v794, %v1215
        %v1374 = vmul.f32 %v794, %v1222
        %v1375 = vmul.f32 %v794, %v1229
        %v1376 = vmul.f32 %v794, %v1236
        %v1377 = vmul.f32 %v794, %v1243
        %v1378 = vmul.f32 %v794, %v1250
        %1443 = vset.pattern.permute.xlu0 0
        %1444 = vperm.xlu0 %1443, %v1315
        %v1445 = vpop.permute.xlu0 %1444
        %1446 = vset.pattern.permute.xlu0 0
        %1447 = vperm.xlu0 %1446, %v1316
        %v1448 = vpop.permute.xlu0 %1447
        %1449 = vset.pattern.permute.xlu0 0
        %1450 = vperm.xlu0 %1449, %v1317
        %v1451 = vpop.permute.xlu0 %1450
        %1452 = vset.pattern.permute.xlu0 0
        %1453 = vperm.xlu0 %1452, %v1318
        %v1454 = vpop.permute.xlu0 %1453
        %1455 = vset.pattern.permute.xlu0 0
        %1456 = vperm.xlu0 %1455, %v1319
        %v1457 = vpop.permute.xlu0 %1456
        %1458 = vset.pattern.permute.xlu0 0
        %1459 = vperm.xlu0 %1458, %v1320
        %v1460 = vpop.permute.xlu0 %1459
        %1461 = vset.pattern.permute.xlu0 0
        %1462 = vperm.xlu0 %1461, %v1321
        %v1463 = vpop.permute.xlu0 %1462
        %1464 = vset.pattern.permute.xlu0 0
        %1465 = vperm.xlu0 %1464, %v1322
        %v1466 = vpop.permute.xlu0 %1465
        %1467 = vset.pattern.permute.xlu0 0
        %1468 = vperm.xlu0 %1467, %v1323
        %v1469 = vpop.permute.xlu0 %1468
        %1470 = vset.pattern.permute.xlu0 0
        %1471 = vperm.xlu0 %1470, %v1324
        %v1472 = vpop.permute.xlu0 %1471
        %1473 = vset.pattern.permute.xlu0 0
        %1474 = vperm.xlu0 %1473, %v1325
        %v1475 = vpop.permute.xlu0 %1474
        %1476 = vset.pattern.permute.xlu0 0
        %1477 = vperm.xlu0 %1476, %v1326
        %v1478 = vpop.permute.xlu0 %1477
        %1479 = vset.pattern.permute.xlu0 0
        %1480 = vperm.xlu0 %1479, %v1327
        %v1481 = vpop.permute.xlu0 %1480
        %1482 = vset.pattern.permute.xlu0 0
        %1483 = vperm.xlu0 %1482, %v1328
        %v1484 = vpop.permute.xlu0 %1483
        %1485 = vset.pattern.permute.xlu0 0
        %1486 = vperm.xlu0 %1485, %v1329
        %v1487 = vpop.permute.xlu0 %1486
        %1488 = vset.pattern.permute.xlu0 0
        %1489 = vperm.xlu0 %1488, %v1330
        %v1490 = vpop.permute.xlu0 %1489
        %1491 = vset.pattern.permute.xlu0 0
        %1492 = vperm.xlu0 %1491, %v1331
        %v1493 = vpop.permute.xlu0 %1492
        %1494 = vset.pattern.permute.xlu0 0
        %1495 = vperm.xlu0 %1494, %v1332
        %v1496 = vpop.permute.xlu0 %1495
        %1497 = vset.pattern.permute.xlu0 0
        %1498 = vperm.xlu0 %1497, %v1333
        %v1499 = vpop.permute.xlu0 %1498
        %1500 = vset.pattern.permute.xlu0 0
        %1501 = vperm.xlu0 %1500, %v1334
        %v1502 = vpop.permute.xlu0 %1501
        %1503 = vset.pattern.permute.xlu0 0
        %1504 = vperm.xlu0 %1503, %v1335
        %v1505 = vpop.permute.xlu0 %1504
        %1506 = vset.pattern.permute.xlu0 0
        %1507 = vperm.xlu0 %1506, %v1336
        %v1508 = vpop.permute.xlu0 %1507
        %1509 = vset.pattern.permute.xlu0 0
        %1510 = vperm.xlu0 %1509, %v1337
        %v1511 = vpop.permute.xlu0 %1510
        %1512 = vset.pattern.permute.xlu0 0
        %1513 = vperm.xlu0 %1512, %v1338
        %v1514 = vpop.permute.xlu0 %1513
        %1515 = vset.pattern.permute.xlu0 0
        %1516 = vperm.xlu0 %1515, %v1339
        %v1517 = vpop.permute.xlu0 %1516
        %1518 = vset.pattern.permute.xlu0 0
        %1519 = vperm.xlu0 %1518, %v1340
        %v1520 = vpop.permute.xlu0 %1519
        %1521 = vset.pattern.permute.xlu0 0
        %1522 = vperm.xlu0 %1521, %v1341
        %v1523 = vpop.permute.xlu0 %1522
        %1524 = vset.pattern.permute.xlu0 0
        %1525 = vperm.xlu0 %1524, %v1342
        %v1526 = vpop.permute.xlu0 %1525
        %1527 = vset.pattern.permute.xlu0 0
        %1528 = vperm.xlu0 %1527, %v1343
        %v1529 = vpop.permute.xlu0 %1528
        %1530 = vset.pattern.permute.xlu0 0
        %1531 = vperm.xlu0 %1530, %v1344
        %v1532 = vpop.permute.xlu0 %1531
        %1533 = vset.pattern.permute.xlu0 0
        %1534 = vperm.xlu0 %1533, %v1345
        %v1535 = vpop.permute.xlu0 %1534
        %1536 = vset.pattern.permute.xlu0 0
        %1537 = vperm.xlu0 %1536, %v1346
        %v1538 = vpop.permute.xlu0 %1537
        %1539 = vset.pattern.permute.xlu0 0
        %1540 = vperm.xlu0 %1539, %v1347
        %v1541 = vpop.permute.xlu0 %1540
        %1542 = vset.pattern.permute.xlu0 0
        %1543 = vperm.xlu0 %1542, %v1348
        %v1544 = vpop.permute.xlu0 %1543
        %1545 = vset.pattern.permute.xlu0 0
        %1546 = vperm.xlu0 %1545, %v1349
        %v1547 = vpop.permute.xlu0 %1546
        %1548 = vset.pattern.permute.xlu0 0
        %1549 = vperm.xlu0 %1548, %v1350
        %v1550 = vpop.permute.xlu0 %1549
        %1551 = vset.pattern.permute.xlu0 0
        %1552 = vperm.xlu0 %1551, %v1351
        %v1553 = vpop.permute.xlu0 %1552
        %1554 = vset.pattern.permute.xlu0 0
        %1555 = vperm.xlu0 %1554, %v1352
        %v1556 = vpop.permute.xlu0 %1555
        %1557 = vset.pattern.permute.xlu0 0
        %1558 = vperm.xlu0 %1557, %v1353
        %v1559 = vpop.permute.xlu0 %1558
        %1560 = vset.pattern.permute.xlu0 0
        %1561 = vperm.xlu0 %1560, %v1354
        %v1562 = vpop.permute.xlu0 %1561
        %1563 = vset.pattern.permute.xlu0 0
        %1564 = vperm.xlu0 %1563, %v1355
        %v1565 = vpop.permute.xlu0 %1564
        %1566 = vset.pattern.permute.xlu0 0
        %1567 = vperm.xlu0 %1566, %v1356
        %v1568 = vpop.permute.xlu0 %1567
        %1569 = vset.pattern.permute.xlu0 0
        %1570 = vperm.xlu0 %1569, %v1357
        %v1571 = vpop.permute.xlu0 %1570
        %1572 = vset.pattern.permute.xlu0 0
        %1573 = vperm.xlu0 %1572, %v1358
        %v1574 = vpop.permute.xlu0 %1573
        %1575 = vset.pattern.permute.xlu0 0
        %1576 = vperm.xlu0 %1575, %v1359
        %v1577 = vpop.permute.xlu0 %1576
        %1578 = vset.pattern.permute.xlu0 0
        %1579 = vperm.xlu0 %1578, %v1360
        %v1580 = vpop.permute.xlu0 %1579
        %1581 = vset.pattern.permute.xlu0 0
        %1582 = vperm.xlu0 %1581, %v1361
        %v1583 = vpop.permute.xlu0 %1582
        %1584 = vset.pattern.permute.xlu0 0
        %1585 = vperm.xlu0 %1584, %v1362
        %v1586 = vpop.permute.xlu0 %1585
        %1587 = vset.pattern.permute.xlu0 0
        %1588 = vperm.xlu0 %1587, %v1363
        %v1589 = vpop.permute.xlu0 %1588
        %1590 = vset.pattern.permute.xlu0 0
        %1591 = vperm.xlu0 %1590, %v1364
        %v1592 = vpop.permute.xlu0 %1591
        %1593 = vset.pattern.permute.xlu0 0
        %1594 = vperm.xlu0 %1593, %v1365
        %v1595 = vpop.permute.xlu0 %1594
        %1596 = vset.pattern.permute.xlu0 0
        %1597 = vperm.xlu0 %1596, %v1366
        %v1598 = vpop.permute.xlu0 %1597
        %1599 = vset.pattern.permute.xlu0 0
        %1600 = vperm.xlu0 %1599, %v1367
        %v1601 = vpop.permute.xlu0 %1600
        %1602 = vset.pattern.permute.xlu0 0
        %1603 = vperm.xlu0 %1602, %v1368
        %v1604 = vpop.permute.xlu0 %1603
        %1605 = vset.pattern.permute.xlu0 0
        %1606 = vperm.xlu0 %1605, %v1369
        %v1607 = vpop.permute.xlu0 %1606
        %1608 = vset.pattern.permute.xlu0 0
        %1609 = vperm.xlu0 %1608, %v1370
        %v1610 = vpop.permute.xlu0 %1609
        %1611 = vset.pattern.permute.xlu0 0
        %1612 = vperm.xlu0 %1611, %v1371
        %v1613 = vpop.permute.xlu0 %1612
        %1614 = vset.pattern.permute.xlu0 0
        %1615 = vperm.xlu0 %1614, %v1372
        %v1616 = vpop.permute.xlu0 %1615
        %1617 = vset.pattern.permute.xlu0 0
        %1618 = vperm.xlu0 %1617, %v1373
        %v1619 = vpop.permute.xlu0 %1618
        %1620 = vset.pattern.permute.xlu0 0
        %1621 = vperm.xlu0 %1620, %v1374
        %v1622 = vpop.permute.xlu0 %1621
        %1623 = vset.pattern.permute.xlu0 0
        %1624 = vperm.xlu0 %1623, %v1375
        %v1625 = vpop.permute.xlu0 %1624
        %1626 = vset.pattern.permute.xlu0 0
        %1627 = vperm.xlu0 %1626, %v1376
        %v1628 = vpop.permute.xlu0 %1627
        %1629 = vset.pattern.permute.xlu0 0
        %1630 = vperm.xlu0 %1629, %v1377
        %v1631 = vpop.permute.xlu0 %1630
        %1632 = vset.pattern.permute.xlu0 0
        %1633 = vperm.xlu0 %1632, %v1378
        %v1634 = vpop.permute.xlu0 %1633
        %v1635 = vlaneseq
        %v1636 = vshrl.u32 %v1635, 7
        %v1637 = vsub.s32 %v608, %v1636
        %v1638 = vrot.slane %v1445, %v1637
        %v1639 = vlaneseq
        %v1640 = vshrl.u32 %v1639, 7
        %v1641 = vsub.s32 %v608, %v1640
        %v1642 = vrot.slane %v1448, %v1641
        %v1643 = vlaneseq
        %v1644 = vshrl.u32 %v1643, 7
        %v1645 = vsub.s32 %v608, %v1644
        %v1646 = vrot.slane %v1451, %v1645
        %v1647 = vlaneseq
        %v1648 = vshrl.u32 %v1647, 7
        %v1649 = vsub.s32 %v608, %v1648
        %v1650 = vrot.slane %v1454, %v1649
        %v1651 = vlaneseq
        %v1652 = vshrl.u32 %v1651, 7
        %v1653 = vsub.s32 %v608, %v1652
        %v1654 = vrot.slane %v1457, %v1653
        %v1655 = vlaneseq
        %v1656 = vshrl.u32 %v1655, 7
        %v1657 = vsub.s32 %v608, %v1656
        %v1658 = vrot.slane %v1460, %v1657
        %v1659 = vlaneseq
        %v1660 = vshrl.u32 %v1659, 7
        %v1661 = vsub.s32 %v608, %v1660
        %v1662 = vrot.slane %v1463, %v1661
        %v1663 = vlaneseq
        %v1664 = vshrl.u32 %v1663, 7
        %v1665 = vsub.s32 %v608, %v1664
        %v1666 = vrot.slane %v1466, %v1665
        %v1667 = vlaneseq
        %v1668 = vshrl.u32 %v1667, 7
        %v1669 = vsub.s32 %v608, %v1668
        %v1670 = vrot.slane %v1469, %v1669
        %v1671 = vlaneseq
        %v1672 = vshrl.u32 %v1671, 7
        %v1673 = vsub.s32 %v608, %v1672
        %v1674 = vrot.slane %v1472, %v1673
        %v1675 = vlaneseq
        %v1676 = vshrl.u32 %v1675, 7
        %v1677 = vsub.s32 %v608, %v1676
        %v1678 = vrot.slane %v1475, %v1677
        %v1679 = vlaneseq
        %v1680 = vshrl.u32 %v1679, 7
        %v1681 = vsub.s32 %v608, %v1680
        %v1682 = vrot.slane %v1478, %v1681
        %v1683 = vlaneseq
        %v1684 = vshrl.u32 %v1683, 7
        %v1685 = vsub.s32 %v608, %v1684
        %v1686 = vrot.slane %v1481, %v1685
        %v1687 = vlaneseq
        %v1688 = vshrl.u32 %v1687, 7
        %v1689 = vsub.s32 %v608, %v1688
        %v1690 = vrot.slane %v1484, %v1689
        %v1691 = vlaneseq
        %v1692 = vshrl.u32 %v1691, 7
        %v1693 = vsub.s32 %v608, %v1692
        %v1694 = vrot.slane %v1487, %v1693
        %v1695 = vlaneseq
        %v1696 = vshrl.u32 %v1695, 7
        %v1697 = vsub.s32 %v608, %v1696
        %v1698 = vrot.slane %v1490, %v1697
        %v1699 = vlaneseq
        %v1700 = vshrl.u32 %v1699, 7
        %v1701 = vsub.s32 %v608, %v1700
        %v1702 = vrot.slane %v1493, %v1701
        %v1703 = vlaneseq
        %v1704 = vshrl.u32 %v1703, 7
        %v1705 = vsub.s32 %v608, %v1704
        %v1706 = vrot.slane %v1496, %v1705
        %v1707 = vlaneseq
        %v1708 = vshrl.u32 %v1707, 7
        %v1709 = vsub.s32 %v608, %v1708
        %v1710 = vrot.slane %v1499, %v1709
        %v1711 = vlaneseq
        %v1712 = vshrl.u32 %v1711, 7
        %v1713 = vsub.s32 %v608, %v1712
        %v1714 = vrot.slane %v1502, %v1713
        %v1715 = vlaneseq
        %v1716 = vshrl.u32 %v1715, 7
        %v1717 = vsub.s32 %v608, %v1716
        %v1718 = vrot.slane %v1505, %v1717
        %v1719 = vlaneseq
        %v1720 = vshrl.u32 %v1719, 7
        %v1721 = vsub.s32 %v608, %v1720
        %v1722 = vrot.slane %v1508, %v1721
        %v1723 = vlaneseq
        %v1724 = vshrl.u32 %v1723, 7
        %v1725 = vsub.s32 %v608, %v1724
        %v1726 = vrot.slane %v1511, %v1725
        %v1727 = vlaneseq
        %v1728 = vshrl.u32 %v1727, 7
        %v1729 = vsub.s32 %v608, %v1728
        %v1730 = vrot.slane %v1514, %v1729
        %v1731 = vlaneseq
        %v1732 = vshrl.u32 %v1731, 7
        %v1733 = vsub.s32 %v608, %v1732
        %v1734 = vrot.slane %v1517, %v1733
        %v1735 = vlaneseq
        %v1736 = vshrl.u32 %v1735, 7
        %v1737 = vsub.s32 %v608, %v1736
        %v1738 = vrot.slane %v1520, %v1737
        %v1739 = vlaneseq
        %v1740 = vshrl.u32 %v1739, 7
        %v1741 = vsub.s32 %v608, %v1740
        %v1742 = vrot.slane %v1523, %v1741
        %v1743 = vlaneseq
        %v1744 = vshrl.u32 %v1743, 7
        %v1745 = vsub.s32 %v608, %v1744
        %v1746 = vrot.slane %v1526, %v1745
        %v1747 = vlaneseq
        %v1748 = vshrl.u32 %v1747, 7
        %v1749 = vsub.s32 %v608, %v1748
        %v1750 = vrot.slane %v1529, %v1749
        %v1751 = vlaneseq
        %v1752 = vshrl.u32 %v1751, 7
        %v1753 = vsub.s32 %v608, %v1752
        %v1754 = vrot.slane %v1532, %v1753
        %v1755 = vlaneseq
        %v1756 = vshrl.u32 %v1755, 7
        %v1757 = vsub.s32 %v608, %v1756
        %v1758 = vrot.slane %v1535, %v1757
        %v1759 = vlaneseq
        %v1760 = vshrl.u32 %v1759, 7
        %v1761 = vsub.s32 %v608, %v1760
        %v1762 = vrot.slane %v1538, %v1761
        %v1763 = vlaneseq
        %v1764 = vshrl.u32 %v1763, 7
        %v1765 = vsub.s32 %v608, %v1764
        %v1766 = vrot.slane %v1541, %v1765
        %v1767 = vlaneseq
        %v1768 = vshrl.u32 %v1767, 7
        %v1769 = vsub.s32 %v608, %v1768
        %v1770 = vrot.slane %v1544, %v1769
        %v1771 = vlaneseq
        %v1772 = vshrl.u32 %v1771, 7
        %v1773 = vsub.s32 %v608, %v1772
        %v1774 = vrot.slane %v1547, %v1773
        %v1775 = vlaneseq
        %v1776 = vshrl.u32 %v1775, 7
        %v1777 = vsub.s32 %v608, %v1776
        %v1778 = vrot.slane %v1550, %v1777
        %v1779 = vlaneseq
        %v1780 = vshrl.u32 %v1779, 7
        %v1781 = vsub.s32 %v608, %v1780
        %v1782 = vrot.slane %v1553, %v1781
        %v1783 = vlaneseq
        %v1784 = vshrl.u32 %v1783, 7
        %v1785 = vsub.s32 %v608, %v1784
        %v1786 = vrot.slane %v1556, %v1785
        %v1787 = vlaneseq
        %v1788 = vshrl.u32 %v1787, 7
        %v1789 = vsub.s32 %v608, %v1788
        %v1790 = vrot.slane %v1559, %v1789
        %v1791 = vlaneseq
        %v1792 = vshrl.u32 %v1791, 7
        %v1793 = vsub.s32 %v608, %v1792
        %v1794 = vrot.slane %v1562, %v1793
        %v1795 = vlaneseq
        %v1796 = vshrl.u32 %v1795, 7
        %v1797 = vsub.s32 %v608, %v1796
        %v1798 = vrot.slane %v1565, %v1797
        %v1799 = vlaneseq
        %v1800 = vshrl.u32 %v1799, 7
        %v1801 = vsub.s32 %v608, %v1800
        %v1802 = vrot.slane %v1568, %v1801
        %v1803 = vlaneseq
        %v1804 = vshrl.u32 %v1803, 7
        %v1805 = vsub.s32 %v608, %v1804
        %v1806 = vrot.slane %v1571, %v1805
        %v1807 = vlaneseq
        %v1808 = vshrl.u32 %v1807, 7
        %v1809 = vsub.s32 %v608, %v1808
        %v1810 = vrot.slane %v1574, %v1809
        %v1811 = vlaneseq
        %v1812 = vshrl.u32 %v1811, 7
        %v1813 = vsub.s32 %v608, %v1812
        %v1814 = vrot.slane %v1577, %v1813
        %v1815 = vlaneseq
        %v1816 = vshrl.u32 %v1815, 7
        %v1817 = vsub.s32 %v608, %v1816
        %v1818 = vrot.slane %v1580, %v1817
        %v1819 = vlaneseq
        %v1820 = vshrl.u32 %v1819, 7
        %v1821 = vsub.s32 %v608, %v1820
        %v1822 = vrot.slane %v1583, %v1821
        %v1823 = vlaneseq
        %v1824 = vshrl.u32 %v1823, 7
        %v1825 = vsub.s32 %v608, %v1824
        %v1826 = vrot.slane %v1586, %v1825
        %v1827 = vlaneseq
        %v1828 = vshrl.u32 %v1827, 7
        %v1829 = vsub.s32 %v608, %v1828
        %v1830 = vrot.slane %v1589, %v1829
        %v1831 = vlaneseq
        %v1832 = vshrl.u32 %v1831, 7
        %v1833 = vsub.s32 %v608, %v1832
        %v1834 = vrot.slane %v1592, %v1833
        %v1835 = vlaneseq
        %v1836 = vshrl.u32 %v1835, 7
        %v1837 = vsub.s32 %v608, %v1836
        %v1838 = vrot.slane %v1595, %v1837
        %v1839 = vlaneseq
        %v1840 = vshrl.u32 %v1839, 7
        %v1841 = vsub.s32 %v608, %v1840
        %v1842 = vrot.slane %v1598, %v1841
        %v1843 = vlaneseq
        %v1844 = vshrl.u32 %v1843, 7
        %v1845 = vsub.s32 %v608, %v1844
        %v1846 = vrot.slane %v1601, %v1845
        %v1847 = vlaneseq
        %v1848 = vshrl.u32 %v1847, 7
        %v1849 = vsub.s32 %v608, %v1848
        %v1850 = vrot.slane %v1604, %v1849
        %v1851 = vlaneseq
        %v1852 = vshrl.u32 %v1851, 7
        %v1853 = vsub.s32 %v608, %v1852
        %v1854 = vrot.slane %v1607, %v1853
        %v1855 = vlaneseq
        %v1856 = vshrl.u32 %v1855, 7
        %v1857 = vsub.s32 %v608, %v1856
        %v1858 = vrot.slane %v1610, %v1857
        %v1859 = vlaneseq
        %v1860 = vshrl.u32 %v1859, 7
        %v1861 = vsub.s32 %v608, %v1860
        %v1862 = vrot.slane %v1613, %v1861
        %v1863 = vlaneseq
        %v1864 = vshrl.u32 %v1863, 7
        %v1865 = vsub.s32 %v608, %v1864
        %v1866 = vrot.slane %v1616, %v1865
        %v1867 = vlaneseq
        %v1868 = vshrl.u32 %v1867, 7
        %v1869 = vsub.s32 %v608, %v1868
        %v1870 = vrot.slane %v1619, %v1869
        %v1871 = vlaneseq
        %v1872 = vshrl.u32 %v1871, 7
        %v1873 = vsub.s32 %v608, %v1872
        %v1874 = vrot.slane %v1622, %v1873
        %v1875 = vlaneseq
        %v1876 = vshrl.u32 %v1875, 7
        %v1877 = vsub.s32 %v608, %v1876
        %v1878 = vrot.slane %v1625, %v1877
        %v1879 = vlaneseq
        %v1880 = vshrl.u32 %v1879, 7
        %v1881 = vsub.s32 %v608, %v1880
        %v1882 = vrot.slane %v1628, %v1881
        %v1883 = vlaneseq
        %v1884 = vshrl.u32 %v1883, 7
        %v1885 = vsub.s32 %v608, %v1884
        %v1886 = vrot.slane %v1631, %v1885
        %v1887 = vlaneseq
        %v1888 = vshrl.u32 %v1887, 7
        %v1889 = vsub.s32 %v608, %v1888
        %v1890 = vrot.slane %v1634, %v1889
        %v1891 = vsel %vm779, %v1642, %v1638
        %v1892 = vsel %vm781, %v1646, %v1891
        %v1893 = vsel %vm783, %v1650, %v1892
        %vm1894 = vcmask 1044484
        %v1895 = vsel %vm1894, %v1654, %v1893
        %vm1896 = vcmask 1045509
        %v1897 = vsel %vm1896, %v1658, %v1895
        %vm1898 = vcmask 1046534
        %v1899 = vsel %vm1898, %v1662, %v1897
        %vm1900 = vcmask 1047559
        %v1901 = vsel %vm1900, %v1666, %v1899
        %v1902 = vsel %vm779, %v1674, %v1670
        %v1903 = vsel %vm781, %v1678, %v1902
        %v1904 = vsel %vm783, %v1682, %v1903
        %v1905 = vsel %vm1894, %v1686, %v1904
        %v1906 = vsel %vm1896, %v1690, %v1905
        %v1907 = vsel %vm1898, %v1694, %v1906
        %v1908 = vsel %vm1900, %v1698, %v1907
        %v1909 = vsel %vm779, %v1706, %v1702
        %v1910 = vsel %vm781, %v1710, %v1909
        %v1911 = vsel %vm783, %v1714, %v1910
        %v1912 = vsel %vm1894, %v1718, %v1911
        %v1913 = vsel %vm1896, %v1722, %v1912
        %v1914 = vsel %vm1898, %v1726, %v1913
        %v1915 = vsel %vm1900, %v1730, %v1914
        %v1916 = vsel %vm779, %v1738, %v1734
        %v1917 = vsel %vm781, %v1742, %v1916
        %v1918 = vsel %vm783, %v1746, %v1917
        %v1919 = vsel %vm1894, %v1750, %v1918
        %v1920 = vsel %vm1896, %v1754, %v1919
        %v1921 = vsel %vm1898, %v1758, %v1920
        %v1922 = vsel %vm1900, %v1762, %v1921
        %v1923 = vsel %vm779, %v1770, %v1766
        %v1924 = vsel %vm781, %v1774, %v1923
        %v1925 = vsel %vm783, %v1778, %v1924
        %v1926 = vsel %vm1894, %v1782, %v1925
        %v1927 = vsel %vm1896, %v1786, %v1926
        %v1928 = vsel %vm1898, %v1790, %v1927
        %v1929 = vsel %vm1900, %v1794, %v1928
        %v1930 = vsel %vm779, %v1802, %v1798
        %v1931 = vsel %vm781, %v1806, %v1930
        %v1932 = vsel %vm783, %v1810, %v1931
        %v1933 = vsel %vm1894, %v1814, %v1932
        %v1934 = vsel %vm1896, %v1818, %v1933
        %v1935 = vsel %vm1898, %v1822, %v1934
        %v1936 = vsel %vm1900, %v1826, %v1935
        %v1937 = vsel %vm779, %v1834, %v1830
        %v1938 = vsel %vm781, %v1838, %v1937
        %v1939 = vsel %vm783, %v1842, %v1938
        %v1940 = vsel %vm1894, %v1846, %v1939
        %v1941 = vsel %vm1896, %v1850, %v1940
        %v1942 = vsel %vm1898, %v1854, %v1941
        %v1943 = vsel %vm1900, %v1858, %v1942
        %v1944 = vsel %vm779, %v1866, %v1862
        %v1945 = vsel %vm781, %v1870, %v1944
        %v1946 = vsel %vm783, %v1874, %v1945
        %v1947 = vsel %vm1894, %v1878, %v1946
        %v1948 = vsel %vm1896, %v1882, %v1947
        %v1949 = vsel %vm1898, %v1886, %v1948
        %v1950 = vsel %vm1900, %v1890, %v1949
        %vm1959 = vcmask 31744
        %v1960 = vsel %vm1959, %v1901, 0.0
        %1961 = vadd.xlane.f32.xlu0 %v1960
        %v1962 = vpop.xlane.xlu0 %1961
        %v1963 = vsel %vm1959, %v1908, 0.0
        %1964 = vadd.xlane.f32.xlu0 %v1963
        %v1965 = vpop.xlane.xlu0 %1964
        %v1966 = vsel %vm1959, %v1915, 0.0
        %1967 = vadd.xlane.f32.xlu0 %v1966
        %v1968 = vpop.xlane.xlu0 %1967
        %v1969 = vsel %vm1959, %v1922, 0.0
        %1970 = vadd.xlane.f32.xlu0 %v1969
        %v1971 = vpop.xlane.xlu0 %1970
        %v1972 = vsel %vm1959, %v1929, 0.0
        %1973 = vadd.xlane.f32.xlu0 %v1972
        %v1974 = vpop.xlane.xlu0 %1973
        %v1975 = vsel %vm1959, %v1936, 0.0
        %1976 = vadd.xlane.f32.xlu0 %v1975
        %v1977 = vpop.xlane.xlu0 %1976
        %v1978 = vsel %vm1959, %v1943, 0.0
        %1979 = vadd.xlane.f32.xlu0 %v1978
        %v1980 = vpop.xlane.xlu0 %1979
        %v1981 = vsel %vm1959, %v1950, 0.0
        %1982 = vadd.xlane.f32.xlu0 %v1981
        %v1983 = vpop.xlane.xlu0 %1982
        %v1984 = vxor.u32 %v1962, 2147483648
        %v1985 = vxor.u32 %v1965, 2147483648
        %v1986 = vxor.u32 %v1968, 2147483648
        %v1987 = vxor.u32 %v1971, 2147483648
        %v1988 = vxor.u32 %v1974, 2147483648
        %v1989 = vxor.u32 %v1977, 2147483648
        %v1990 = vxor.u32 %v1980, 2147483648
        %v1991 = vxor.u32 %v1983, 2147483648
        %v1992 = vmul.f32 %v1984, 1.442695
        %v1993 = vpow.pop %v1992
        %v1994 = vmul.f32 %v1985, 1.442695
        %v1995 = vpow.pop %v1994
        %v1996 = vmul.f32 %v1986, 1.442695
        %v1997 = vpow.pop %v1996
        %v1998 = vmul.f32 %v1987, 1.442695
        %v1999 = vpow.pop %v1998
        %v2000 = vmul.f32 %v1988, 1.442695
        %v2001 = vpow.pop %v2000
        %v2002 = vmul.f32 %v1989, 1.442695
        %v2003 = vpow.pop %v2002
        %v2004 = vmul.f32 %v1990, 1.442695
        %v2005 = vpow.pop %v2004
        %v2006 = vmul.f32 %v1991, 1.442695
        %v2007 = vpow.pop %v2006
        %v2008 = vadd.f32 %v1993, 1.0
        %v2009 = vadd.f32 %v1995, 1.0
        %v2010 = vadd.f32 %v1997, 1.0
        %v2011 = vadd.f32 %v1999, 1.0
        %v2012 = vadd.f32 %v2001, 1.0
        %v2013 = vadd.f32 %v2003, 1.0
        %v2014 = vadd.f32 %v2005, 1.0
        %v2015 = vadd.f32 %v2007, 1.0
        %v2016 = vrcp.pop %v2008
        %v2017 = vmul.f32 1.0, %v2016
        %v2018 = vrcp.pop %v2009
        %v2019 = vmul.f32 1.0, %v2018
        %v2020 = vrcp.pop %v2010
        %v2021 = vmul.f32 1.0, %v2020
        %v2022 = vrcp.pop %v2011
        %v2023 = vmul.f32 1.0, %v2022
        %v2024 = vrcp.pop %v2012
        %v2025 = vmul.f32 1.0, %v2024
        %v2026 = vrcp.pop %v2013
        %v2027 = vmul.f32 1.0, %v2026
        %v2028 = vrcp.pop %v2014
        %v2029 = vmul.f32 1.0, %v2028
        %v2030 = vrcp.pop %v2015
        %v2031 = vmul.f32 1.0, %v2030
        %v2032 = vmul.f32 %v217, %v2017
        %v2033 = vmul.f32 %v218, %v2017
        %v2034 = vmul.f32 %v219, %v2019
        %v2035 = vmul.f32 %v220, %v2019
        %v2036 = vmul.f32 %v221, %v2021
        %v2037 = vmul.f32 %v222, %v2021
        %v2038 = vmul.f32 %v223, %v2023
        %v2039 = vmul.f32 %v224, %v2023
        %v2040 = vmul.f32 %v225, %v2025
        %v2041 = vmul.f32 %v226, %v2025
        %v2042 = vmul.f32 %v227, %v2027
        %v2043 = vmul.f32 %v228, %v2027
        %v2044 = vmul.f32 %v229, %v2029
        %v2045 = vmul.f32 %v230, %v2029
        %v2046 = vmul.f32 %v231, %v2031
        %v2047 = vmul.f32 %v232, %v2031
        %2048 = vst [vmem:[%s216] sm:$0xff] %v2032
        %2049 = vst [vmem:[%s216 + $0x8] sm:$0xff] %v2033
        %2050 = vst [vmem:[%s216 + $0x10] sm:$0xff] %v2034
        %2051 = vst [vmem:[%s216 + $0x18] sm:$0xff] %v2035
        %2052 = vst [vmem:[%s216 + $0x20] sm:$0xff] %v2036
        %2053 = vst [vmem:[%s216 + $0x28] sm:$0xff] %v2037
        %2054 = vst [vmem:[%s216 + $0x30] sm:$0xff] %v2038
        %2055 = vst [vmem:[%s216 + $0x38] sm:$0xff] %v2039
        %2056 = vst [vmem:[%s216 + $0x40] sm:$0xff] %v2040
        %2057 = vst [vmem:[%s216 + $0x48] sm:$0xff] %v2041
        %2058 = vst [vmem:[%s216 + $0x50] sm:$0xff] %v2042
        %2059 = vst [vmem:[%s216 + $0x58] sm:$0xff] %v2043
        %2060 = vst [vmem:[%s216 + $0x60] sm:$0xff] %v2044
        %2061 = vst [vmem:[%s216 + $0x68] sm:$0xff] %v2045
        %2062 = vst [vmem:[%s216 + $0x70] sm:$0xff] %v2046
        %2063 = vst [vmem:[%s216 + $0x78] sm:$0xff] %v2047
        %s2064 = sand.u32 %s119, 1
        %s2065 = scalar_lea.sflag [#allocation5], %s2064
        %s2066 = sand.u32 %s119, 1
        %s2067 = smul.addr %s2066, 128
        %s2068 = scalar_lea.vmem [#allocation6], %s2067
        // Predicated region
        $region41: #{tpu_custom_call.1} parent=35 // pred_check
          %p2069 = pneg %p129
        $region42: #{tpu_custom_call.1} parent=35 // pred_check_branch
          %2071 = sbr.rel (%p2069) target = $region44
        $region43: #{tpu_custom_call.1} parent=35 // pred_region
          %s2073 = ssub.s32 2048, 2048
          %2074 = vsyncadd %s2065, %s2073
          %s2075 = smul.addr %s22, 16
          %s2076 = smul.addr %s2075, 128
          %s2077 = scalar_lea.hbm %s4, %s2076
          %s2078 = sshll.u32 %s2068, 4
          %s2079 = int_to_ptr.vmem [resolvable:$true] %s2078
          %2084 = dma.vmem_to_hbm [thread:$0]  %s2079, 2048, %s2077, %s2065, 256, 256, 16
        $region44: #{tpu_custom_call.1} parent=35 // pred_fallthru
          _
      $region36: #{tpu_custom_call.1} parent=5 // pred_fallthru
        _
      %p2085 = scmp.le.s32.totalorder 2, %s17
      // Predicated region
      $region45: #{tpu_custom_call.1} parent=5 // pred_check
        %p2086 = pneg %p2085
      $region46: #{tpu_custom_call.1} parent=5 // pred_check_branch
        %2088 = sbr.rel (%p2086) target = $region48
      $region47: #{tpu_custom_call.1} parent=5 // pred_region
        %s2089 = ssub.s32 %s17, 2
        // Predicated region
        $region49: #{tpu_custom_call.1} parent=47 // pred_check
          %p2090 = pneg %p135
        $region50: #{tpu_custom_call.1} parent=47 // pred_check_branch
          %2092 = sbr.rel (%p2090) target = $region52
        $region51: #{tpu_custom_call.1} parent=47 // pred_region
          %s2093 = sand.u32 %s120, 1
          %s2094 = scalar_lea.sflag [#allocation5], %s2093
          %s2095 = sand.u32 %s120, 1
          %s2096 = smul.addr %s2095, 128
          %s2097 = scalar_lea.vmem [#allocation6], %s2096
          %2098 = dma.done %s2094, 2048
        $region52: #{tpu_custom_call.1} parent=47 // pred_fallthru
          _
      $region48: #{tpu_custom_call.1} parent=5 // pred_fallthru
        _
    $region6: #{tpu_custom_call.1} parent=1 // loop_footer
      %s21 = sadd.s32 1, %s17
    $region7: #{tpu_custom_call.1} parent=1 // loop_footer_branch
      %16 = sbr.rel target = $region3
    $region8: #{tpu_custom_call.1} parent=1 // loop_exit
      _
    %2099 = vsyncpa [#allocation4], 1
    %s2100 = scalar_lea.sflag [#allocation4], 1
    %2101 = vsyncpa %s2100, 1
    %2102 = vsyncpa [#allocation5], 1
    %s2103 = scalar_lea.sflag [#allocation5], 1
    %2104 = vsyncpa %s2103, 1

</llo_original>
